<compile_context>
chip_gen: v7x
topology: tpu7x:2x2x1
jax: 0.10.0
libtpu: 0.0.40
codegen_flags: <defaults>
</compile_context>

<pallas_src>
import jax
import jax.numpy as jnp
from jax.experimental import pallas as pl
from jax.experimental.pallas import tpu as pltpu


def _sigmoid(x):
    # Single EUP op (tanh) instead of exp + reciprocal.
    return 0.5 * (jnp.tanh(0.5 * x) + 1.0)


def _span_lstm_kernel(x_ref, w_ih_ref, w_hh_ref, b_ref, out_ref, h_sc, c_sc):
    # x_ref   : (1, tile_j, Din)  tokens j_base .. j_base+tile_j-1 of batch b
    # w_ih_ref: (Din, 4D), w_hh_ref: (D, 4D), b_ref: (1, 4D); gate order [i,f,g,o]
    # out_ref : (1, tile_i, tile_j, D) -> ret[b, i_base:+tile_i, j_base:+tile_j]
    # h_sc/c_sc: (tile_i, D) f32 recurrent state, carried across the j grid axis
    it = pl.program_id(1)
    jt = pl.program_id(2)
    tile_i, D = h_sc.shape
    tile_j = out_ref.shape[2]

    @pl.when(jt == 0)
    def _():
        h_sc[...] = jnp.zeros((tile_i, D), jnp.float32)
        c_sc[...] = jnp.zeros((tile_i, D), jnp.float32)

    i_base = it * tile_i
    j_base = jt * tile_j

    # Whole block strictly below the diagonal: every (i, j) has j < i, so the
    # output is all zeros and no row in this i-tile has started yet.
    below_diag = (j_base + tile_j - 1) < i_base

    @pl.when(below_diag)
    def _():
        out_ref[...] = jnp.zeros(out_ref.shape, out_ref.dtype)

    @pl.when(jnp.logical_not(below_diag))
    def _():
        # Hoisted input projection for this j-tile: (tile_j, 4D), shared by all
        # start rows i (computed once, outside the sequential recurrence).
        # TODO(synk): for production sizes cast activations/weights to bf16 for
        # the MXU (keep f32 accumulation and f32 h/c); kept f32 here for exact
        # parity with the f32 reference check.
        gx = (jnp.dot(x_ref[0], w_ih_ref[...],
                      preferred_element_type=jnp.float32) + b_ref[...])
        w_hh = w_hh_ref[...]
        row_i = i_base + jax.lax.broadcasted_iota(jnp.int32, (tile_i, 1), 0)

        h = h_sc[...]
        c = c_sc[...]
        # tile_j is a small compile-time constant -> fully unrolled static loop;
        # every slice below is static.
        for t in range(tile_j):
            j = j_base + t
            started = row_i < j              # rows whose span began before j
            h_in = jnp.where(started, h, 0.0)   # rows with i == j restart from 0
            c_in = jnp.where(started, c, 0.0)
            gates = (jnp.dot(h_in, w_hh, preferred_element_type=jnp.float32)
                     + gx[t:t + 1, :])       # (tile_i, 4D)
            i_g = _sigmoid(gates[:, 0 * D:1 * D])
            f_g = _sigmoid(gates[:, 1 * D:2 * D])
            g_g = jnp.tanh(gates[:, 2 * D:3 * D])
            o_g = _sigmoid(gates[:, 3 * D:4 * D])
            c = f_g * c_in + i_g * g_g
            h = o_g * jnp.tanh(c)
            valid = row_i <= j               # upper triangle: keep j >= i only
            out_ref[0, :, t:t + 1, :] = (
                jnp.where(valid, h, 0.0).astype(out_ref.dtype)[:, None, :])
        h_sc[...] = h
        c_sc[...] = c


def lstm_span_table(input_embeds, w_ih_t, w_hh_t, b, *, tile_i=None, tile_j=None):
    B, S, Din = input_embeds.shape
    D = w_hh_t.shape[0]
    # Tile sizing:
    #   tile_i bounds the recurrent-state rows / matmul M per core,
    #   tile_j bounds the unrolled step count and the output block's j extent.
    # For production S, size them from the VMEM budget (output block is
    # tile_i*tile_j*D*4 bytes, double-buffered) and keep tile_j a multiple of 8.
    if tile_i is None:
        tile_i = S if S <= 128 else 128
    if tile_j is None:
        tile_j = S if S <= 16 else 16
    assert S % tile_i == 0 and S % tile_j == 0
    grid = (B, S // tile_i, S // tile_j)   # j innermost: carries the LSTM state

    return pl.pallas_call(
        _span_lstm_kernel,
        out_shape=jax.ShapeDtypeStruct((B, S, S, D), jnp.float32),
        grid_spec=pltpu.PrefetchScalarGridSpec(
            num_scalar_prefetch=0,
            grid=grid,
            in_specs=[
                pl.BlockSpec((1, tile_j, Din), lambda bb, it, jt: (bb, jt, 0)),
                pl.BlockSpec((Din, 4 * D), lambda bb, it, jt: (0, 0)),
                pl.BlockSpec((D, 4 * D), lambda bb, it, jt: (0, 0)),
                pl.BlockSpec((1, 4 * D), lambda bb, it, jt: (0, 0)),
            ],
            out_specs=pl.BlockSpec((1, tile_i, tile_j, D),
                                   lambda bb, it, jt: (bb, it, jt, 0)),
            scratch_shapes=[pltpu.VMEM((tile_i, D), jnp.float32),
                            pltpu.VMEM((tile_i, D), jnp.float32)],
        ),
        compiler_params=pltpu.CompilerParams(
            dimension_semantics=("parallel", "parallel", "arbitrary")),
    )(input_embeds, w_ih_t, w_hh_t, b)


def b1_forward(input_embeds, hx, params):
    # hx is accepted but ignored, exactly like the PyTorch module
    # (self.rnn(input_embeds_repeat) is called without hx -> zero init state).
    # TODO(synk): nn.Dropout(p=0.3) is stochastic in train mode; implemented as
    # identity (eval-mode semantics).
    del hx
    w_ih_t, w_hh_t, b = params
    return lstm_span_table(input_embeds, w_ih_t, w_hh_t, b)


def init_params(key, in_dim, out_dim):
    # PyTorch nn.LSTM init: U(-1/sqrt(hidden), 1/sqrt(hidden)), gate order [i,f,g,o]
    k = 1.0 / (out_dim ** 0.5)
    k1, k2, k3, k4 = jax.random.split(key, 4)
    w_ih = jax.random.uniform(k1, (4 * out_dim, in_dim), jnp.float32, -k, k)
    w_hh = jax.random.uniform(k2, (4 * out_dim, out_dim), jnp.float32, -k, k)
    b_ih = jax.random.uniform(k3, (4 * out_dim,), jnp.float32, -k, k)
    b_hh = jax.random.uniform(k4, (4 * out_dim,), jnp.float32, -k, k)
    return w_ih.T, w_hh.T, (b_ih + b_hh)[None, :]


def reference_forward(x, params):
    # Pure-JAX reference (rolled-repeat + lax.scan LSTM) for correctness check.
    w_ih_t, w_hh_t, b = params
    B, S, Din = x.shape
    D = w_hh_t.shape[0]
    idx = (jnp.arange(S)[:, None] + jnp.arange(S)[None, :]) % S
    x_rep = x[:, idx, :].reshape(B * S, S, Din)
    N = B * S

    def step(carry, x_t):
        h, c = carry
        gates = x_t @ w_ih_t + h @ w_hh_t + b
        i = jax.nn.sigmoid(gates[:, :D])
        f = jax.nn.sigmoid(gates[:, D:2 * D])
        g = jnp.tanh(gates[:, 2 * D:3 * D])
        o = jax.nn.sigmoid(gates[:, 3 * D:])
        c = f * c + i * g
        h = o * jnp.tanh(c)
        return (h, c), h

    _, hs = jax.lax.scan(step,
                         (jnp.zeros((N, D)), jnp.zeros((N, D))),
                         jnp.transpose(x_rep, (1, 0, 2)))
    out4 = jnp.transpose(hs, (1, 0, 2)).reshape(B, S, S, D)
    jmat = jnp.arange(S)[None, :]
    imat = jnp.arange(S)[:, None]
    tidx = jnp.clip(jmat - imat, 0, S - 1)
    gathered = out4[:, jnp.arange(S)[:, None], tidx, :]
    mask = (jmat >= imat)[None, :, :, None]
    return jnp.where(mask, gathered, 0.0)


if __name__ == "__main__":
    B, S, in_dim, out_dim = 2, 8, 16, 32
    key = jax.random.PRNGKey(0)
    kx, kp = jax.random.split(key)

    input_embeds = jax.random.normal(kx, (B, S, in_dim), jnp.float32)
    hx = (jnp.zeros((1, B, out_dim), jnp.float32),
          jnp.zeros((1, B, out_dim), jnp.float32))      # ignored by the module
    params = init_params(kp, in_dim, out_dim)

    ret = jax.jit(b1_forward)(input_embeds, hx, params)
    ret = jax.block_until_ready(ret)

    ref = reference_forward(input_embeds, params)
    assert ret.shape == (B, S, S, out_dim)
    assert jnp.allclose(ret, ref, atol=1e-4, rtol=1e-4), "mismatch vs reference"

    print("KERNEL_OK")
</pallas_src>

<mosaic_0001>
module attributes {stable_mosaic.version = 11 : i64} {
  func.func @_span_lstm_kernel(%arg0: i32, %arg1: i32, %arg2: i32, %arg3: memref<1x8x16xf32, #tpu.memory_space<vmem>>, %arg4: memref<16x128xf32, #tpu.memory_space<vmem>>, %arg5: memref<32x128xf32, #tpu.memory_space<vmem>>, %arg6: memref<1x128xf32, #tpu.memory_space<vmem>>, %arg7: memref<1x8x8x32xf32, #tpu.memory_space<vmem>>, %arg8: memref<8x32xf32, #tpu.memory_space<vmem>>, %arg9: memref<8x32xf32, #tpu.memory_space<vmem>>) attributes {dimension_semantics = [#tpu.dimension_semantics<parallel>, #tpu.dimension_semantics<parallel>, #tpu.dimension_semantics<arbitrary>], iteration_bounds = array<i64: 2, 1, 1>, scalar_prefetch = 0 : i64, scratch_operands = 2 : i64, tpu.core_type = #tpu.core_type<tc>, window_params = [{transform_indices = @transform_0, window_bounds = array<i64: 1, 8, 16>}, {pipeline_mode = #tpu.pipeline_mode<synchronous>, transform_indices = @transform_1, window_bounds = array<i64: 16, 128>}, {pipeline_mode = #tpu.pipeline_mode<synchronous>, transform_indices = @transform_2, window_bounds = array<i64: 32, 128>}, {pipeline_mode = #tpu.pipeline_mode<synchronous>, transform_indices = @transform_3, window_bounds = array<i64: 1, 128>}, {transform_indices = @transform_4, window_bounds = array<i64: 1, 8, 8, 32>}]} {
    %c0_i32 = arith.constant 0 : i32
    %0 = arith.cmpi eq, %arg2, %c0_i32 : i32
    %1 = arith.extui %0 : i1 to i32
    %c0_i32_0 = arith.constant 0 : i32
    %2 = arith.cmpi ne, %1, %c0_i32_0 : i32
    scf.if %2 {
      %cst = arith.constant 0.000000e+00 : f32
      %13 = vector.broadcast %cst : f32 to vector<8x32xf32>
      %c0 = arith.constant 0 : index
      %c0_5 = arith.constant 0 : index
      %14 = vector.load %arg8[%c0, %c0_5] : memref<8x32xf32, #tpu.memory_space<vmem>>, vector<8x32xf32>
      tpu.vector_store %arg8[%c0, %c0_5], %13 {strides = array<i32>} : memref<8x32xf32, #tpu.memory_space<vmem>>, vector<8x32xf32>,
      %cst_6 = arith.constant 0.000000e+00 : f32
      %15 = vector.broadcast %cst_6 : f32 to vector<8x32xf32>
      %c0_7 = arith.constant 0 : index
      %c0_8 = arith.constant 0 : index
      %16 = vector.load %arg9[%c0_7, %c0_8] : memref<8x32xf32, #tpu.memory_space<vmem>>, vector<8x32xf32>
      tpu.vector_store %arg9[%c0_7, %c0_8], %15 {strides = array<i32>} : memref<8x32xf32, #tpu.memory_space<vmem>>, vector<8x32xf32>,
    } else {
    }
    %c8_i32 = arith.constant 8 : i32
    %3 = arith.muli %arg1, %c8_i32 : i32
    %c8_i32_1 = arith.constant 8 : i32
    %4 = arith.muli %arg2, %c8_i32_1 : i32
    %c8_i32_2 = arith.constant 8 : i32
    %5 = arith.addi %4, %c8_i32_2 : i32
    %c1_i32 = arith.constant 1 : i32
    %6 = arith.subi %5, %c1_i32 : i32
    %7 = arith.cmpi slt, %6, %3 : i32
    %8 = arith.extui %7 : i1 to i32
    %c0_i32_3 = arith.constant 0 : i32
    %9 = arith.cmpi ne, %8, %c0_i32_3 : i32
    scf.if %9 {
      %cst = arith.constant 0.000000e+00 : f32
      %13 = vector.broadcast %cst : f32 to vector<1x8x8x32xf32>
      %c0 = arith.constant 0 : index
      %c0_5 = arith.constant 0 : index
      %c0_6 = arith.constant 0 : index
      %c0_7 = arith.constant 0 : index
      %14 = vector.load %arg7[%c0, %c0_5, %c0_6, %c0_7] : memref<1x8x8x32xf32, #tpu.memory_space<vmem>>, vector<1x8x8x32xf32>
      tpu.vector_store %arg7[%c0, %c0_5, %c0_6, %c0_7], %13 {strides = array<i32>} : memref<1x8x8x32xf32, #tpu.memory_space<vmem>>, vector<1x8x8x32xf32>,
    } else {
    }
    %true = arith.constant true
    %10 = arith.xori %7, %true : i1
    %11 = arith.extui %10 : i1 to i32
    %c0_i32_4 = arith.constant 0 : i32
    %12 = arith.cmpi ne, %11, %c0_i32_4 : i32
    scf.if %12 {
      %c0 = arith.constant 0 : index
      %c0_5 = arith.constant 0 : index
      %c0_6 = arith.constant 0 : index
      %13 = vector.load %arg3[%c0, %c0_5, %c0_6] : memref<1x8x16xf32, #tpu.memory_space<vmem>>, vector<1x8x16xf32>
      %14 = vector.shape_cast %13 : vector<1x8x16xf32> to vector<8x16xf32>
      %c0_7 = arith.constant 0 : index
      %c0_8 = arith.constant 0 : index
      %15 = vector.load %arg4[%c0_7, %c0_8] : memref<16x128xf32, #tpu.memory_space<vmem>>, vector<16x128xf32>
      %cst = arith.constant dense<0.000000e+00> : vector<8x128xf32>
      %16 = tpu.matmul %14, %15, %cst {dimension_numbers = #tpu.dot_dimension_numbers<[1], [0], [0], [1], [0, 0, 1, 1], [], []>} : vector<8x16xf32>, vector<16x128xf32>, vector<8x128xf32> -> vector<8x128xf32>
      %c0_9 = arith.constant 0 : index
      %c0_10 = arith.constant 0 : index
      %17 = vector.load %arg6[%c0_9, %c0_10] : memref<1x128xf32, #tpu.memory_space<vmem>>, vector<1x128xf32>
      %18 = vector.broadcast %17 : vector<1x128xf32> to vector<8x128xf32>
      %19 = arith.addf %16, %18 : vector<8x128xf32>
      %c0_11 = arith.constant 0 : index
      %c0_12 = arith.constant 0 : index
      %20 = vector.load %arg5[%c0_11, %c0_12] : memref<32x128xf32, #tpu.memory_space<vmem>>, vector<32x128xf32>
      %21 = tpu.iota {dimensions = array<i32: 0>} : vector<8x1xi32>
      %22 = vector.broadcast %3 : i32 to vector<8x1xi32>
      %23 = arith.addi %22, %21 : vector<8x1xi32>
      %c0_13 = arith.constant 0 : index
      %c0_14 = arith.constant 0 : index
      %24 = vector.load %arg8[%c0_13, %c0_14] : memref<8x32xf32, #tpu.memory_space<vmem>>, vector<8x32xf32>
      %c0_15 = arith.constant 0 : index
      %c0_16 = arith.constant 0 : index
      %25 = vector.load %arg9[%c0_15, %c0_16] : memref<8x32xf32, #tpu.memory_space<vmem>>, vector<8x32xf32>
      %c0_i32_17 = arith.constant 0 : i32
      %26 = arith.addi %4, %c0_i32_17 : i32
      %27 = vector.broadcast %26 : i32 to vector<8x1xi32>
      %28 = arith.cmpi slt, %23, %27 : vector<8x1xi32>
      %cst_18 = arith.constant 0.000000e+00 : f32
      %29 = vector.shape_cast %28 : vector<8x1xi1> to vector<8x1xi1>
      %30 = vector.broadcast %29 : vector<8x1xi1> to vector<8x32xi1>
      %31 = vector.broadcast %cst_18 : f32 to vector<8x32xf32>
      %32 = arith.select %30, %24, %31 : vector<8x32xi1>, vector<8x32xf32>
      %cst_19 = arith.constant 0.000000e+00 : f32
      %33 = vector.shape_cast %28 : vector<8x1xi1> to vector<8x1xi1>
      %34 = vector.broadcast %33 : vector<8x1xi1> to vector<8x32xi1>
      %35 = vector.broadcast %cst_19 : f32 to vector<8x32xf32>
      %36 = arith.select %34, %25, %35 : vector<8x32xi1>, vector<8x32xf32>
      %cst_20 = arith.constant dense<0.000000e+00> : vector<8x128xf32>
      %37 = tpu.matmul %32, %20, %cst_20 {dimension_numbers = #tpu.dot_dimension_numbers<[1], [0], [0], [1], [0, 0, 1, 1], [], []>} : vector<8x32xf32>, vector<32x128xf32>, vector<8x128xf32> -> vector<8x128xf32>
      %38 = vector.extract_strided_slice %19 {offsets = [0, 0], sizes = [1, 128], strides = [1, 1]} : vector<8x128xf32> to vector<1x128xf32>
      %39 = vector.broadcast %38 : vector<1x128xf32> to vector<8x128xf32>
      %40 = arith.addf %37, %39 : vector<8x128xf32>
      %41 = vector.extract_strided_slice %40 {offsets = [0, 0], sizes = [8, 32], strides = [1, 1]} : vector<8x128xf32> to vector<8x32xf32>
      %cst_21 = arith.constant 5.000000e-01 : f32
      %42 = vector.broadcast %cst_21 : f32 to vector<8x32xf32>
      %43 = arith.mulf %42, %41 : vector<8x32xf32>
      %44 = math.tanh %43 : vector<8x32xf32>
      %cst_22 = arith.constant 1.000000e+00 : f32
      %45 = vector.broadcast %cst_22 : f32 to vector<8x32xf32>
      %46 = arith.addf %44, %45 : vector<8x32xf32>
      %cst_23 = arith.constant 5.000000e-01 : f32
      %47 = vector.broadcast %cst_23 : f32 to vector<8x32xf32>
      %48 = arith.mulf %47, %46 : vector<8x32xf32>
      %49 = vector.extract_strided_slice %40 {offsets = [0, 32], sizes = [8, 32], strides = [1, 1]} : vector<8x128xf32> to vector<8x32xf32>
      %cst_24 = arith.constant 5.000000e-01 : f32
      %50 = vector.broadcast %cst_24 : f32 to vector<8x32xf32>
      %51 = arith.mulf %50, %49 : vector<8x32xf32>
      %52 = math.tanh %51 : vector<8x32xf32>
      %cst_25 = arith.constant 1.000000e+00 : f32
      %53 = vector.broadcast %cst_25 : f32 to vector<8x32xf32>
      %54 = arith.addf %52, %53 : vector<8x32xf32>
      %cst_26 = arith.constant 5.000000e-01 : f32
      %55 = vector.broadcast %cst_26 : f32 to vector<8x32xf32>
      %56 = arith.mulf %55, %54 : vector<8x32xf32>
      %57 = vector.extract_strided_slice %40 {offsets = [0, 64], sizes = [8, 32], strides = [1, 1]} : vector<8x128xf32> to vector<8x32xf32>
      %58 = math.tanh %57 : vector<8x32xf32>
      %59 = vector.extract_strided_slice %40 {offsets = [0, 96], sizes = [8, 32], strides = [1, 1]} : vector<8x128xf32> to vector<8x32xf32>
      %cst_27 = arith.constant 5.000000e-01 : f32
      %60 = vector.broadcast %cst_27 : f32 to vector<8x32xf32>
      %61 = arith.mulf %60, %59 : vector<8x32xf32>
      %62 = math.tanh %61 : vector<8x32xf32>
      %cst_28 = arith.constant 1.000000e+00 : f32
      %63 = vector.broadcast %cst_28 : f32 to vector<8x32xf32>
      %64 = arith.addf %62, %63 : vector<8x32xf32>
      %cst_29 = arith.constant 5.000000e-01 : f32
      %65 = vector.broadcast %cst_29 : f32 to vector<8x32xf32>
      %66 = arith.mulf %65, %64 : vector<8x32xf32>
      %67 = arith.mulf %56, %36 : vector<8x32xf32>
      %68 = arith.mulf %48, %58 : vector<8x32xf32>
      %69 = arith.addf %67, %68 : vector<8x32xf32>
      %70 = math.tanh %69 : vector<8x32xf32>
      %71 = arith.mulf %66, %70 : vector<8x32xf32>
      %72 = vector.broadcast %26 : i32 to vector<8x1xi32>
      %73 = arith.cmpi sle, %23, %72 : vector<8x1xi32>
      %cst_30 = arith.constant 0.000000e+00 : f32
      %74 = vector.shape_cast %73 : vector<8x1xi1> to vector<8x1xi1>
      %75 = vector.broadcast %74 : vector<8x1xi1> to vector<8x32xi1>
      %76 = vector.broadcast %cst_30 : f32 to vector<8x32xf32>
      %77 = arith.select %75, %71, %76 : vector<8x32xi1>, vector<8x32xf32>
      %78 = vector.shape_cast %77 : vector<8x32xf32> to vector<8x1x32xf32>
      %c0_31 = arith.constant 0 : index
      %c0_32 = arith.constant 0 : index
      %c0_33 = arith.constant 0 : index
      %c0_34 = arith.constant 0 : index
      %79 = vector.load %arg7[%c0_31, %c0_32, %c0_33, %c0_34] : memref<1x8x8x32xf32, #tpu.memory_space<vmem>>, vector<1x8x1x32xf32>
      %80 = vector.shape_cast %79 : vector<1x8x1x32xf32> to vector<8x1x32xf32>
      %81 = vector.shape_cast %78 : vector<8x1x32xf32> to vector<1x8x1x32xf32>
      tpu.vector_store %arg7[%c0_31, %c0_32, %c0_33, %c0_34], %81 {strides = array<i32>} : memref<1x8x8x32xf32, #tpu.memory_space<vmem>>, vector<1x8x1x32xf32>,
      %c1_i32_35 = arith.constant 1 : i32
      %82 = arith.addi %4, %c1_i32_35 : i32
      %83 = vector.broadcast %82 : i32 to vector<8x1xi32>
      %84 = arith.cmpi slt, %23, %83 : vector<8x1xi32>
      %cst_36 = arith.constant 0.000000e+00 : f32
      %85 = vector.shape_cast %84 : vector<8x1xi1> to vector<8x1xi1>
      %86 = vector.broadcast %85 : vector<8x1xi1> to vector<8x32xi1>
      %87 = vector.broadcast %cst_36 : f32 to vector<8x32xf32>
      %88 = arith.select %86, %71, %87 : vector<8x32xi1>, vector<8x32xf32>
      %cst_37 = arith.constant 0.000000e+00 : f32
      %89 = vector.shape_cast %84 : vector<8x1xi1> to vector<8x1xi1>
      %90 = vector.broadcast %89 : vector<8x1xi1> to vector<8x32xi1>
      %91 = vector.broadcast %cst_37 : f32 to vector<8x32xf32>
      %92 = arith.select %90, %69, %91 : vector<8x32xi1>, vector<8x32xf32>
      %cst_38 = arith.constant dense<0.000000e+00> : vector<8x128xf32>
      %93 = tpu.matmul %88, %20, %cst_38 {dimension_numbers = #tpu.dot_dimension_numbers<[1], [0], [0], [1], [0, 0, 1, 1], [], []>} : vector<8x32xf32>, vector<32x128xf32>, vector<8x128xf32> -> vector<8x128xf32>
      %94 = vector.extract_strided_slice %19 {offsets = [1, 0], sizes = [1, 128], strides = [1, 1]} : vector<8x128xf32> to vector<1x128xf32>
      %95 = vector.broadcast %94 : vector<1x128xf32> to vector<8x128xf32>
      %96 = arith.addf %93, %95 : vector<8x128xf32>
      %97 = vector.extract_strided_slice %96 {offsets = [0, 0], sizes = [8, 32], strides = [1, 1]} : vector<8x128xf32> to vector<8x32xf32>
      %cst_39 = arith.constant 5.000000e-01 : f32
      %98 = vector.broadcast %cst_39 : f32 to vector<8x32xf32>
      %99 = arith.mulf %98, %97 : vector<8x32xf32>
      %100 = math.tanh %99 : vector<8x32xf32>
      %cst_40 = arith.constant 1.000000e+00 : f32
      %101 = vector.broadcast %cst_40 : f32 to vector<8x32xf32>
      %102 = arith.addf %100, %101 : vector<8x32xf32>
      %cst_41 = arith.constant 5.000000e-01 : f32
      %103 = vector.broadcast %cst_41 : f32 to vector<8x32xf32>
      %104 = arith.mulf %103, %102 : vector<8x32xf32>
      %105 = vector.extract_strided_slice %96 {offsets = [0, 32], sizes = [8, 32], strides = [1, 1]} : vector<8x128xf32> to vector<8x32xf32>
      %cst_42 = arith.constant 5.000000e-01 : f32
      %106 = vector.broadcast %cst_42 : f32 to vector<8x32xf32>
      %107 = arith.mulf %106, %105 : vector<8x32xf32>
      %108 = math.tanh %107 : vector<8x32xf32>
      %cst_43 = arith.constant 1.000000e+00 : f32
      %109 = vector.broadcast %cst_43 : f32 to vector<8x32xf32>
      %110 = arith.addf %108, %109 : vector<8x32xf32>
      %cst_44 = arith.constant 5.000000e-01 : f32
      %111 = vector.broadcast %cst_44 : f32 to vector<8x32xf32>
      %112 = arith.mulf %111, %110 : vector<8x32xf32>
      %113 = vector.extract_strided_slice %96 {offsets = [0, 64], sizes = [8, 32], strides = [1, 1]} : vector<8x128xf32> to vector<8x32xf32>
      %114 = math.tanh %113 : vector<8x32xf32>
      %115 = vector.extract_strided_slice %96 {offsets = [0, 96], sizes = [8, 32], strides = [1, 1]} : vector<8x128xf32> to vector<8x32xf32>
      %cst_45 = arith.constant 5.000000e-01 : f32
      %116 = vector.broadcast %cst_45 : f32 to vector<8x32xf32>
      %117 = arith.mulf %116, %115 : vector<8x32xf32>
      %118 = math.tanh %117 : vector<8x32xf32>
      %cst_46 = arith.constant 1.000000e+00 : f32
      %119 = vector.broadcast %cst_46 : f32 to vector<8x32xf32>
      %120 = arith.addf %118, %119 : vector<8x32xf32>
      %cst_47 = arith.constant 5.000000e-01 : f32
      %121 = vector.broadcast %cst_47 : f32 to vector<8x32xf32>
      %122 = arith.mulf %121, %120 : vector<8x32xf32>
      %123 = arith.mulf %112, %92 : vector<8x32xf32>
      %124 = arith.mulf %104, %114 : vector<8x32xf32>
      %125 = arith.addf %123, %124 : vector<8x32xf32>
      %126 = math.tanh %125 : vector<8x32xf32>
      %127 = arith.mulf %122, %126 : vector<8x32xf32>
      %128 = vector.broadcast %82 : i32 to vector<8x1xi32>
      %129 = arith.cmpi sle, %23, %128 : vector<8x1xi32>
      %cst_48 = arith.constant 0.000000e+00 : f32
      %130 = vector.shape_cast %129 : vector<8x1xi1> to vector<8x1xi1>
      %131 = vector.broadcast %130 : vector<8x1xi1> to vector<8x32xi1>
      %132 = vector.broadcast %cst_48 : f32 to vector<8x32xf32>
      %133 = arith.select %131, %127, %132 : vector<8x32xi1>, vector<8x32xf32>
      %134 = vector.shape_cast %133 : vector<8x32xf32> to vector<8x1x32xf32>
      %c0_49 = arith.constant 0 : index
      %c0_50 = arith.constant 0 : index
      %c1 = arith.constant 1 : index
      %c0_51 = arith.constant 0 : index
      %135 = vector.load %arg7[%c0_49, %c0_50, %c1, %c0_51] : memref<1x8x8x32xf32, #tpu.memory_space<vmem>>, vector<1x8x1x32xf32>
      %136 = vector.shape_cast %135 : vector<1x8x1x32xf32> to vector<8x1x32xf32>
      %137 = vector.shape_cast %134 : vector<8x1x32xf32> to vector<1x8x1x32xf32>
      tpu.vector_store %arg7[%c0_49, %c0_50, %c1, %c0_51], %137 {strides = array<i32>} : memref<1x8x8x32xf32, #tpu.memory_space<vmem>>, vector<1x8x1x32xf32>,
      %c2_i32 = arith.constant 2 : i32
      %138 = arith.addi %4, %c2_i32 : i32
      %139 = vector.broadcast %138 : i32 to vector<8x1xi32>
      %140 = arith.cmpi slt, %23, %139 : vector<8x1xi32>
      %cst_52 = arith.constant 0.000000e+00 : f32
      %141 = vector.shape_cast %140 : vector<8x1xi1> to vector<8x1xi1>
      %142 = vector.broadcast %141 : vector<8x1xi1> to vector<8x32xi1>
      %143 = vector.broadcast %cst_52 : f32 to vector<8x32xf32>
      %144 = arith.select %142, %127, %143 : vector<8x32xi1>, vector<8x32xf32>
      %cst_53 = arith.constant 0.000000e+00 : f32
      %145 = vector.shape_cast %140 : vector<8x1xi1> to vector<8x1xi1>
      %146 = vector.broadcast %145 : vector<8x1xi1> to vector<8x32xi1>
      %147 = vector.broadcast %cst_53 : f32 to vector<8x32xf32>
      %148 = arith.select %146, %125, %147 : vector<8x32xi1>, vector<8x32xf32>
      %cst_54 = arith.constant dense<0.000000e+00> : vector<8x128xf32>
      %149 = tpu.matmul %144, %20, %cst_54 {dimension_numbers = #tpu.dot_dimension_numbers<[1], [0], [0], [1], [0, 0, 1, 1], [], []>} : vector<8x32xf32>, vector<32x128xf32>, vector<8x128xf32> -> vector<8x128xf32>
      %150 = vector.extract_strided_slice %19 {offsets = [2, 0], sizes = [1, 128], strides = [1, 1]} : vector<8x128xf32> to vector<1x128xf32>
      %151 = vector.broadcast %150 : vector<1x128xf32> to vector<8x128xf32>
      %152 = arith.addf %149, %151 : vector<8x128xf32>
      %153 = vector.extract_strided_slice %152 {offsets = [0, 0], sizes = [8, 32], strides = [1, 1]} : vector<8x128xf32> to vector<8x32xf32>
      %cst_55 = arith.constant 5.000000e-01 : f32
      %154 = vector.broadcast %cst_55 : f32 to vector<8x32xf32>
      %155 = arith.mulf %154, %153 : vector<8x32xf32>
      %156 = math.tanh %155 : vector<8x32xf32>
      %cst_56 = arith.constant 1.000000e+00 : f32
      %157 = vector.broadcast %cst_56 : f32 to vector<8x32xf32>
      %158 = arith.addf %156, %157 : vector<8x32xf32>
      %cst_57 = arith.constant 5.000000e-01 : f32
      %159 = vector.broadcast %cst_57 : f32 to vector<8x32xf32>
      %160 = arith.mulf %159, %158 : vector<8x32xf32>
      %161 = vector.extract_strided_slice %152 {offsets = [0, 32], sizes = [8, 32], strides = [1, 1]} : vector<8x128xf32> to vector<8x32xf32>
      %cst_58 = arith.constant 5.000000e-01 : f32
      %162 = vector.broadcast %cst_58 : f32 to vector<8x32xf32>
      %163 = arith.mulf %162, %161 : vector<8x32xf32>
      %164 = math.tanh %163 : vector<8x32xf32>
      %cst_59 = arith.constant 1.000000e+00 : f32
      %165 = vector.broadcast %cst_59 : f32 to vector<8x32xf32>
      %166 = arith.addf %164, %165 : vector<8x32xf32>
      %cst_60 = arith.constant 5.000000e-01 : f32
      %167 = vector.broadcast %cst_60 : f32 to vector<8x32xf32>
      %168 = arith.mulf %167, %166 : vector<8x32xf32>
      %169 = vector.extract_strided_slice %152 {offsets = [0, 64], sizes = [8, 32], strides = [1, 1]} : vector<8x128xf32> to vector<8x32xf32>
      %170 = math.tanh %169 : vector<8x32xf32>
      %171 = vector.extract_strided_slice %152 {offsets = [0, 96], sizes = [8, 32], strides = [1, 1]} : vector<8x128xf32> to vector<8x32xf32>
      %cst_61 = arith.constant 5.000000e-01 : f32
      %172 = vector.broadcast %cst_61 : f32 to vector<8x32xf32>
      %173 = arith.mulf %172, %171 : vector<8x32xf32>
      %174 = math.tanh %173 : vector<8x32xf32>
      %cst_62 = arith.constant 1.000000e+00 : f32
      %175 = vector.broadcast %cst_62 : f32 to vector<8x32xf32>
      %176 = arith.addf %174, %175 : vector<8x32xf32>
      %cst_63 = arith.constant 5.000000e-01 : f32
      %177 = vector.broadcast %cst_63 : f32 to vector<8x32xf32>
      %178 = arith.mulf %177, %176 : vector<8x32xf32>
      %179 = arith.mulf %168, %148 : vector<8x32xf32>
      %180 = arith.mulf %160, %170 : vector<8x32xf32>
      %181 = arith.addf %179, %180 : vector<8x32xf32>
      %182 = math.tanh %181 : vector<8x32xf32>
      %183 = arith.mulf %178, %182 : vector<8x32xf32>
      %184 = vector.broadcast %138 : i32 to vector<8x1xi32>
      %185 = arith.cmpi sle, %23, %184 : vector<8x1xi32>
      %cst_64 = arith.constant 0.000000e+00 : f32
      %186 = vector.shape_cast %185 : vector<8x1xi1> to vector<8x1xi1>
      %187 = vector.broadcast %186 : vector<8x1xi1> to vector<8x32xi1>
      %188 = vector.broadcast %cst_64 : f32 to vector<8x32xf32>
      %189 = arith.select %187, %183, %188 : vector<8x32xi1>, vector<8x32xf32>
      %190 = vector.shape_cast %189 : vector<8x32xf32> to vector<8x1x32xf32>
      %c0_65 = arith.constant 0 : index
      %c0_66 = arith.constant 0 : index
      %c2 = arith.constant 2 : index
      %c0_67 = arith.constant 0 : index
      %191 = vector.load %arg7[%c0_65, %c0_66, %c2, %c0_67] : memref<1x8x8x32xf32, #tpu.memory_space<vmem>>, vector<1x8x1x32xf32>
      %192 = vector.shape_cast %191 : vector<1x8x1x32xf32> to vector<8x1x32xf32>
      %193 = vector.shape_cast %190 : vector<8x1x32xf32> to vector<1x8x1x32xf32>
      tpu.vector_store %arg7[%c0_65, %c0_66, %c2, %c0_67], %193 {strides = array<i32>} : memref<1x8x8x32xf32, #tpu.memory_space<vmem>>, vector<1x8x1x32xf32>,
      %c3_i32 = arith.constant 3 : i32
      %194 = arith.addi %4, %c3_i32 : i32
      %195 = vector.broadcast %194 : i32 to vector<8x1xi32>
      %196 = arith.cmpi slt, %23, %195 : vector<8x1xi32>
      %cst_68 = arith.constant 0.000000e+00 : f32
      %197 = vector.shape_cast %196 : vector<8x1xi1> to vector<8x1xi1>
      %198 = vector.broadcast %197 : vector<8x1xi1> to vector<8x32xi1>
      %199 = vector.broadcast %cst_68 : f32 to vector<8x32xf32>
      %200 = arith.select %198, %183, %199 : vector<8x32xi1>, vector<8x32xf32>
      %cst_69 = arith.constant 0.000000e+00 : f32
      %201 = vector.shape_cast %196 : vector<8x1xi1> to vector<8x1xi1>
      %202 = vector.broadcast %201 : vector<8x1xi1> to vector<8x32xi1>
      %203 = vector.broadcast %cst_69 : f32 to vector<8x32xf32>
      %204 = arith.select %202, %181, %203 : vector<8x32xi1>, vector<8x32xf32>
      %cst_70 = arith.constant dense<0.000000e+00> : vector<8x128xf32>
      %205 = tpu.matmul %200, %20, %cst_70 {dimension_numbers = #tpu.dot_dimension_numbers<[1], [0], [0], [1], [0, 0, 1, 1], [], []>} : vector<8x32xf32>, vector<32x128xf32>, vector<8x128xf32> -> vector<8x128xf32>
      %206 = vector.extract_strided_slice %19 {offsets = [3, 0], sizes = [1, 128], strides = [1, 1]} : vector<8x128xf32> to vector<1x128xf32>
      %207 = vector.broadcast %206 : vector<1x128xf32> to vector<8x128xf32>
      %208 = arith.addf %205, %207 : vector<8x128xf32>
      %209 = vector.extract_strided_slice %208 {offsets = [0, 0], sizes = [8, 32], strides = [1, 1]} : vector<8x128xf32> to vector<8x32xf32>
      %cst_71 = arith.constant 5.000000e-01 : f32
      %210 = vector.broadcast %cst_71 : f32 to vector<8x32xf32>
      %211 = arith.mulf %210, %209 : vector<8x32xf32>
      %212 = math.tanh %211 : vector<8x32xf32>
      %cst_72 = arith.constant 1.000000e+00 : f32
      %213 = vector.broadcast %cst_72 : f32 to vector<8x32xf32>
      %214 = arith.addf %212, %213 : vector<8x32xf32>
      %cst_73 = arith.constant 5.000000e-01 : f32
      %215 = vector.broadcast %cst_73 : f32 to vector<8x32xf32>
      %216 = arith.mulf %215, %214 : vector<8x32xf32>
      %217 = vector.extract_strided_slice %208 {offsets = [0, 32], sizes = [8, 32], strides = [1, 1]} : vector<8x128xf32> to vector<8x32xf32>
      %cst_74 = arith.constant 5.000000e-01 : f32
      %218 = vector.broadcast %cst_74 : f32 to vector<8x32xf32>
      %219 = arith.mulf %218, %217 : vector<8x32xf32>
      %220 = math.tanh %219 : vector<8x32xf32>
      %cst_75 = arith.constant 1.000000e+00 : f32
      %221 = vector.broadcast %cst_75 : f32 to vector<8x32xf32>
      %222 = arith.addf %220, %221 : vector<8x32xf32>
      %cst_76 = arith.constant 5.000000e-01 : f32
      %223 = vector.broadcast %cst_76 : f32 to vector<8x32xf32>
      %224 = arith.mulf %223, %222 : vector<8x32xf32>
      %225 = vector.extract_strided_slice %208 {offsets = [0, 64], sizes = [8, 32], strides = [1, 1]} : vector<8x128xf32> to vector<8x32xf32>
      %226 = math.tanh %225 : vector<8x32xf32>
      %227 = vector.extract_strided_slice %208 {offsets = [0, 96], sizes = [8, 32], strides = [1, 1]} : vector<8x128xf32> to vector<8x32xf32>
      %cst_77 = arith.constant 5.000000e-01 : f32
      %228 = vector.broadcast %cst_77 : f32 to vector<8x32xf32>
      %229 = arith.mulf %228, %227 : vector<8x32xf32>
      %230 = math.tanh %229 : vector<8x32xf32>
      %cst_78 = arith.constant 1.000000e+00 : f32
      %231 = vector.broadcast %cst_78 : f32 to vector<8x32xf32>
      %232 = arith.addf %230, %231 : vector<8x32xf32>
      %cst_79 = arith.constant 5.000000e-01 : f32
      %233 = vector.broadcast %cst_79 : f32 to vector<8x32xf32>
      %234 = arith.mulf %233, %232 : vector<8x32xf32>
      %235 = arith.mulf %224, %204 : vector<8x32xf32>
      %236 = arith.mulf %216, %226 : vector<8x32xf32>
      %237 = arith.addf %235, %236 : vector<8x32xf32>
      %238 = math.tanh %237 : vector<8x32xf32>
      %239 = arith.mulf %234, %238 : vector<8x32xf32>
      %240 = vector.broadcast %194 : i32 to vector<8x1xi32>
      %241 = arith.cmpi sle, %23, %240 : vector<8x1xi32>
      %cst_80 = arith.constant 0.000000e+00 : f32
      %242 = vector.shape_cast %241 : vector<8x1xi1> to vector<8x1xi1>
      %243 = vector.broadcast %242 : vector<8x1xi1> to vector<8x32xi1>
      %244 = vector.broadcast %cst_80 : f32 to vector<8x32xf32>
      %245 = arith.select %243, %239, %244 : vector<8x32xi1>, vector<8x32xf32>
      %246 = vector.shape_cast %245 : vector<8x32xf32> to vector<8x1x32xf32>
      %c0_81 = arith.constant 0 : index
      %c0_82 = arith.constant 0 : index
      %c3 = arith.constant 3 : index
      %c0_83 = arith.constant 0 : index
      %247 = vector.load %arg7[%c0_81, %c0_82, %c3, %c0_83] : memref<1x8x8x32xf32, #tpu.memory_space<vmem>>, vector<1x8x1x32xf32>
      %248 = vector.shape_cast %247 : vector<1x8x1x32xf32> to vector<8x1x32xf32>
      %249 = vector.shape_cast %246 : vector<8x1x32xf32> to vector<1x8x1x32xf32>
      tpu.vector_store %arg7[%c0_81, %c0_82, %c3, %c0_83], %249 {strides = array<i32>} : memref<1x8x8x32xf32, #tpu.memory_space<vmem>>, vector<1x8x1x32xf32>,
      %c4_i32 = arith.constant 4 : i32
      %250 = arith.addi %4, %c4_i32 : i32
      %251 = vector.broadcast %250 : i32 to vector<8x1xi32>
      %252 = arith.cmpi slt, %23, %251 : vector<8x1xi32>
      %cst_84 = arith.constant 0.000000e+00 : f32
      %253 = vector.shape_cast %252 : vector<8x1xi1> to vector<8x1xi1>
      %254 = vector.broadcast %253 : vector<8x1xi1> to vector<8x32xi1>
      %255 = vector.broadcast %cst_84 : f32 to vector<8x32xf32>
      %256 = arith.select %254, %239, %255 : vector<8x32xi1>, vector<8x32xf32>
      %cst_85 = arith.constant 0.000000e+00 : f32
      %257 = vector.shape_cast %252 : vector<8x1xi1> to vector<8x1xi1>
      %258 = vector.broadcast %257 : vector<8x1xi1> to vector<8x32xi1>
      %259 = vector.broadcast %cst_85 : f32 to vector<8x32xf32>
      %260 = arith.select %258, %237, %259 : vector<8x32xi1>, vector<8x32xf32>
      %cst_86 = arith.constant dense<0.000000e+00> : vector<8x128xf32>
      %261 = tpu.matmul %256, %20, %cst_86 {dimension_numbers = #tpu.dot_dimension_numbers<[1], [0], [0], [1], [0, 0, 1, 1], [], []>} : vector<8x32xf32>, vector<32x128xf32>, vector<8x128xf32> -> vector<8x128xf32>
      %262 = vector.extract_strided_slice %19 {offsets = [4, 0], sizes = [1, 128], strides = [1, 1]} : vector<8x128xf32> to vector<1x128xf32>
      %263 = vector.broadcast %262 : vector<1x128xf32> to vector<8x128xf32>
      %264 = arith.addf %261, %263 : vector<8x128xf32>
      %265 = vector.extract_strided_slice %264 {offsets = [0, 0], sizes = [8, 32], strides = [1, 1]} : vector<8x128xf32> to vector<8x32xf32>
      %cst_87 = arith.constant 5.000000e-01 : f32
      %266 = vector.broadcast %cst_87 : f32 to vector<8x32xf32>
      %267 = arith.mulf %266, %265 : vector<8x32xf32>
      %268 = math.tanh %267 : vector<8x32xf32>
      %cst_88 = arith.constant 1.000000e+00 : f32
      %269 = vector.broadcast %cst_88 : f32 to vector<8x32xf32>
      %270 = arith.addf %268, %269 : vector<8x32xf32>
      %cst_89 = arith.constant 5.000000e-01 : f32
      %271 = vector.broadcast %cst_89 : f32 to vector<8x32xf32>
      %272 = arith.mulf %271, %270 : vector<8x32xf32>
      %273 = vector.extract_strided_slice %264 {offsets = [0, 32], sizes = [8, 32], strides = [1, 1]} : vector<8x128xf32> to vector<8x32xf32>
      %cst_90 = arith.constant 5.000000e-01 : f32
      %274 = vector.broadcast %cst_90 : f32 to vector<8x32xf32>
      %275 = arith.mulf %274, %273 : vector<8x32xf32>
      %276 = math.tanh %275 : vector<8x32xf32>
      %cst_91 = arith.constant 1.000000e+00 : f32
      %277 = vector.broadcast %cst_91 : f32 to vector<8x32xf32>
      %278 = arith.addf %276, %277 : vector<8x32xf32>
      %cst_92 = arith.constant 5.000000e-01 : f32
      %279 = vector.broadcast %cst_92 : f32 to vector<8x32xf32>
      %280 = arith.mulf %279, %278 : vector<8x32xf32>
      %281 = vector.extract_strided_slice %264 {offsets = [0, 64], sizes = [8, 32], strides = [1, 1]} : vector<8x128xf32> to vector<8x32xf32>
      %282 = math.tanh %281 : vector<8x32xf32>
      %283 = vector.extract_strided_slice %264 {offsets = [0, 96], sizes = [8, 32], strides = [1, 1]} : vector<8x128xf32> to vector<8x32xf32>
      %cst_93 = arith.constant 5.000000e-01 : f32
      %284 = vector.broadcast %cst_93 : f32 to vector<8x32xf32>
      %285 = arith.mulf %284, %283 : vector<8x32xf32>
      %286 = math.tanh %285 : vector<8x32xf32>
      %cst_94 = arith.constant 1.000000e+00 : f32
      %287 = vector.broadcast %cst_94 : f32 to vector<8x32xf32>
      %288 = arith.addf %286, %287 : vector<8x32xf32>
      %cst_95 = arith.constant 5.000000e-01 : f32
      %289 = vector.broadcast %cst_95 : f32 to vector<8x32xf32>
      %290 = arith.mulf %289, %288 : vector<8x32xf32>
      %291 = arith.mulf %280, %260 : vector<8x32xf32>
      %292 = arith.mulf %272, %282 : vector<8x32xf32>
      %293 = arith.addf %291, %292 : vector<8x32xf32>
      %294 = math.tanh %293 : vector<8x32xf32>
      %295 = arith.mulf %290, %294 : vector<8x32xf32>
      %296 = vector.broadcast %250 : i32 to vector<8x1xi32>
      %297 = arith.cmpi sle, %23, %296 : vector<8x1xi32>
      %cst_96 = arith.constant 0.000000e+00 : f32
      %298 = vector.shape_cast %297 : vector<8x1xi1> to vector<8x1xi1>
      %299 = vector.broadcast %298 : vector<8x1xi1> to vector<8x32xi1>
      %300 = vector.broadcast %cst_96 : f32 to vector<8x32xf32>
      %301 = arith.select %299, %295, %300 : vector<8x32xi1>, vector<8x32xf32>
      %302 = vector.shape_cast %301 : vector<8x32xf32> to vector<8x1x32xf32>
      %c0_97 = arith.constant 0 : index
      %c0_98 = arith.constant 0 : index
      %c4 = arith.constant 4 : index
      %c0_99 = arith.constant 0 : index
      %303 = vector.load %arg7[%c0_97, %c0_98, %c4, %c0_99] : memref<1x8x8x32xf32, #tpu.memory_space<vmem>>, vector<1x8x1x32xf32>
      %304 = vector.shape_cast %303 : vector<1x8x1x32xf32> to vector<8x1x32xf32>
      %305 = vector.shape_cast %302 : vector<8x1x32xf32> to vector<1x8x1x32xf32>
      tpu.vector_store %arg7[%c0_97, %c0_98, %c4, %c0_99], %305 {strides = array<i32>} : memref<1x8x8x32xf32, #tpu.memory_space<vmem>>, vector<1x8x1x32xf32>,
      %c5_i32 = arith.constant 5 : i32
      %306 = arith.addi %4, %c5_i32 : i32
      %307 = vector.broadcast %306 : i32 to vector<8x1xi32>
      %308 = arith.cmpi slt, %23, %307 : vector<8x1xi32>
      %cst_100 = arith.constant 0.000000e+00 : f32
      %309 = vector.shape_cast %308 : vector<8x1xi1> to vector<8x1xi1>
      %310 = vector.broadcast %309 : vector<8x1xi1> to vector<8x32xi1>
      %311 = vector.broadcast %cst_100 : f32 to vector<8x32xf32>
      %312 = arith.select %310, %295, %311 : vector<8x32xi1>, vector<8x32xf32>
      %cst_101 = arith.constant 0.000000e+00 : f32
      %313 = vector.shape_cast %308 : vector<8x1xi1> to vector<8x1xi1>
      %314 = vector.broadcast %313 : vector<8x1xi1> to vector<8x32xi1>
      %315 = vector.broadcast %cst_101 : f32 to vector<8x32xf32>
      %316 = arith.select %314, %293, %315 : vector<8x32xi1>, vector<8x32xf32>
      %cst_102 = arith.constant dense<0.000000e+00> : vector<8x128xf32>
      %317 = tpu.matmul %312, %20, %cst_102 {dimension_numbers = #tpu.dot_dimension_numbers<[1], [0], [0], [1], [0, 0, 1, 1], [], []>} : vector<8x32xf32>, vector<32x128xf32>, vector<8x128xf32> -> vector<8x128xf32>
      %318 = vector.extract_strided_slice %19 {offsets = [5, 0], sizes = [1, 128], strides = [1, 1]} : vector<8x128xf32> to vector<1x128xf32>
      %319 = vector.broadcast %318 : vector<1x128xf32> to vector<8x128xf32>
      %320 = arith.addf %317, %319 : vector<8x128xf32>
      %321 = vector.extract_strided_slice %320 {offsets = [0, 0], sizes = [8, 32], strides = [1, 1]} : vector<8x128xf32> to vector<8x32xf32>
      %cst_103 = arith.constant 5.000000e-01 : f32
      %322 = vector.broadcast %cst_103 : f32 to vector<8x32xf32>
      %323 = arith.mulf %322, %321 : vector<8x32xf32>
      %324 = math.tanh %323 : vector<8x32xf32>
      %cst_104 = arith.constant 1.000000e+00 : f32
      %325 = vector.broadcast %cst_104 : f32 to vector<8x32xf32>
      %326 = arith.addf %324, %325 : vector<8x32xf32>
      %cst_105 = arith.constant 5.000000e-01 : f32
      %327 = vector.broadcast %cst_105 : f32 to vector<8x32xf32>
      %328 = arith.mulf %327, %326 : vector<8x32xf32>
      %329 = vector.extract_strided_slice %320 {offsets = [0, 32], sizes = [8, 32], strides = [1, 1]} : vector<8x128xf32> to vector<8x32xf32>
      %cst_106 = arith.constant 5.000000e-01 : f32
      %330 = vector.broadcast %cst_106 : f32 to vector<8x32xf32>
      %331 = arith.mulf %330, %329 : vector<8x32xf32>
      %332 = math.tanh %331 : vector<8x32xf32>
      %cst_107 = arith.constant 1.000000e+00 : f32
      %333 = vector.broadcast %cst_107 : f32 to vector<8x32xf32>
      %334 = arith.addf %332, %333 : vector<8x32xf32>
      %cst_108 = arith.constant 5.000000e-01 : f32
      %335 = vector.broadcast %cst_108 : f32 to vector<8x32xf32>
      %336 = arith.mulf %335, %334 : vector<8x32xf32>
      %337 = vector.extract_strided_slice %320 {offsets = [0, 64], sizes = [8, 32], strides = [1, 1]} : vector<8x128xf32> to vector<8x32xf32>
      %338 = math.tanh %337 : vector<8x32xf32>
      %339 = vector.extract_strided_slice %320 {offsets = [0, 96], sizes = [8, 32], strides = [1, 1]} : vector<8x128xf32> to vector<8x32xf32>
      %cst_109 = arith.constant 5.000000e-01 : f32
      %340 = vector.broadcast %cst_109 : f32 to vector<8x32xf32>
      %341 = arith.mulf %340, %339 : vector<8x32xf32>
      %342 = math.tanh %341 : vector<8x32xf32>
      %cst_110 = arith.constant 1.000000e+00 : f32
      %343 = vector.broadcast %cst_110 : f32 to vector<8x32xf32>
      %344 = arith.addf %342, %343 : vector<8x32xf32>
      %cst_111 = arith.constant 5.000000e-01 : f32
      %345 = vector.broadcast %cst_111 : f32 to vector<8x32xf32>
      %346 = arith.mulf %345, %344 : vector<8x32xf32>
      %347 = arith.mulf %336, %316 : vector<8x32xf32>
      %348 = arith.mulf %328, %338 : vector<8x32xf32>
      %349 = arith.addf %347, %348 : vector<8x32xf32>
      %350 = math.tanh %349 : vector<8x32xf32>
      %351 = arith.mulf %346, %350 : vector<8x32xf32>
      %352 = vector.broadcast %306 : i32 to vector<8x1xi32>
      %353 = arith.cmpi sle, %23, %352 : vector<8x1xi32>
      %cst_112 = arith.constant 0.000000e+00 : f32
      %354 = vector.shape_cast %353 : vector<8x1xi1> to vector<8x1xi1>
      %355 = vector.broadcast %354 : vector<8x1xi1> to vector<8x32xi1>
      %356 = vector.broadcast %cst_112 : f32 to vector<8x32xf32>
      %357 = arith.select %355, %351, %356 : vector<8x32xi1>, vector<8x32xf32>
      %358 = vector.shape_cast %357 : vector<8x32xf32> to vector<8x1x32xf32>
      %c0_113 = arith.constant 0 : index
      %c0_114 = arith.constant 0 : index
      %c5 = arith.constant 5 : index
      %c0_115 = arith.constant 0 : index
      %359 = vector.load %arg7[%c0_113, %c0_114, %c5, %c0_115] : memref<1x8x8x32xf32, #tpu.memory_space<vmem>>, vector<1x8x1x32xf32>
      %360 = vector.shape_cast %359 : vector<1x8x1x32xf32> to vector<8x1x32xf32>
      %361 = vector.shape_cast %358 : vector<8x1x32xf32> to vector<1x8x1x32xf32>
      tpu.vector_store %arg7[%c0_113, %c0_114, %c5, %c0_115], %361 {strides = array<i32>} : memref<1x8x8x32xf32, #tpu.memory_space<vmem>>, vector<1x8x1x32xf32>,
      %c6_i32 = arith.constant 6 : i32
      %362 = arith.addi %4, %c6_i32 : i32
      %363 = vector.broadcast %362 : i32 to vector<8x1xi32>
      %364 = arith.cmpi slt, %23, %363 : vector<8x1xi32>
      %cst_116 = arith.constant 0.000000e+00 : f32
      %365 = vector.shape_cast %364 : vector<8x1xi1> to vector<8x1xi1>
      %366 = vector.broadcast %365 : vector<8x1xi1> to vector<8x32xi1>
      %367 = vector.broadcast %cst_116 : f32 to vector<8x32xf32>
      %368 = arith.select %366, %351, %367 : vector<8x32xi1>, vector<8x32xf32>
      %cst_117 = arith.constant 0.000000e+00 : f32
      %369 = vector.shape_cast %364 : vector<8x1xi1> to vector<8x1xi1>
      %370 = vector.broadcast %369 : vector<8x1xi1> to vector<8x32xi1>
      %371 = vector.broadcast %cst_117 : f32 to vector<8x32xf32>
      %372 = arith.select %370, %349, %371 : vector<8x32xi1>, vector<8x32xf32>
      %cst_118 = arith.constant dense<0.000000e+00> : vector<8x128xf32>
      %373 = tpu.matmul %368, %20, %cst_118 {dimension_numbers = #tpu.dot_dimension_numbers<[1], [0], [0], [1], [0, 0, 1, 1], [], []>} : vector<8x32xf32>, vector<32x128xf32>, vector<8x128xf32> -> vector<8x128xf32>
      %374 = vector.extract_strided_slice %19 {offsets = [6, 0], sizes = [1, 128], strides = [1, 1]} : vector<8x128xf32> to vector<1x128xf32>
      %375 = vector.broadcast %374 : vector<1x128xf32> to vector<8x128xf32>
      %376 = arith.addf %373, %375 : vector<8x128xf32>
      %377 = vector.extract_strided_slice %376 {offsets = [0, 0], sizes = [8, 32], strides = [1, 1]} : vector<8x128xf32> to vector<8x32xf32>
      %cst_119 = arith.constant 5.000000e-01 : f32
      %378 = vector.broadcast %cst_119 : f32 to vector<8x32xf32>
      %379 = arith.mulf %378, %377 : vector<8x32xf32>
      %380 = math.tanh %379 : vector<8x32xf32>
      %cst_120 = arith.constant 1.000000e+00 : f32
      %381 = vector.broadcast %cst_120 : f32 to vector<8x32xf32>
      %382 = arith.addf %380, %381 : vector<8x32xf32>
      %cst_121 = arith.constant 5.000000e-01 : f32
      %383 = vector.broadcast %cst_121 : f32 to vector<8x32xf32>
      %384 = arith.mulf %383, %382 : vector<8x32xf32>
      %385 = vector.extract_strided_slice %376 {offsets = [0, 32], sizes = [8, 32], strides = [1, 1]} : vector<8x128xf32> to vector<8x32xf32>
      %cst_122 = arith.constant 5.000000e-01 : f32
      %386 = vector.broadcast %cst_122 : f32 to vector<8x32xf32>
      %387 = arith.mulf %386, %385 : vector<8x32xf32>
      %388 = math.tanh %387 : vector<8x32xf32>
      %cst_123 = arith.constant 1.000000e+00 : f32
      %389 = vector.broadcast %cst_123 : f32 to vector<8x32xf32>
      %390 = arith.addf %388, %389 : vector<8x32xf32>
      %cst_124 = arith.constant 5.000000e-01 : f32
      %391 = vector.broadcast %cst_124 : f32 to vector<8x32xf32>
      %392 = arith.mulf %391, %390 : vector<8x32xf32>
      %393 = vector.extract_strided_slice %376 {offsets = [0, 64], sizes = [8, 32], strides = [1, 1]} : vector<8x128xf32> to vector<8x32xf32>
      %394 = math.tanh %393 : vector<8x32xf32>
      %395 = vector.extract_strided_slice %376 {offsets = [0, 96], sizes = [8, 32], strides = [1, 1]} : vector<8x128xf32> to vector<8x32xf32>
      %cst_125 = arith.constant 5.000000e-01 : f32
      %396 = vector.broadcast %cst_125 : f32 to vector<8x32xf32>
      %397 = arith.mulf %396, %395 : vector<8x32xf32>
      %398 = math.tanh %397 : vector<8x32xf32>
      %cst_126 = arith.constant 1.000000e+00 : f32
      %399 = vector.broadcast %cst_126 : f32 to vector<8x32xf32>
      %400 = arith.addf %398, %399 : vector<8x32xf32>
      %cst_127 = arith.constant 5.000000e-01 : f32
      %401 = vector.broadcast %cst_127 : f32 to vector<8x32xf32>
      %402 = arith.mulf %401, %400 : vector<8x32xf32>
      %403 = arith.mulf %392, %372 : vector<8x32xf32>
      %404 = arith.mulf %384, %394 : vector<8x32xf32>
      %405 = arith.addf %403, %404 : vector<8x32xf32>
      %406 = math.tanh %405 : vector<8x32xf32>
      %407 = arith.mulf %402, %406 : vector<8x32xf32>
      %408 = vector.broadcast %362 : i32 to vector<8x1xi32>
      %409 = arith.cmpi sle, %23, %408 : vector<8x1xi32>
      %cst_128 = arith.constant 0.000000e+00 : f32
      %410 = vector.shape_cast %409 : vector<8x1xi1> to vector<8x1xi1>
      %411 = vector.broadcast %410 : vector<8x1xi1> to vector<8x32xi1>
      %412 = vector.broadcast %cst_128 : f32 to vector<8x32xf32>
      %413 = arith.select %411, %407, %412 : vector<8x32xi1>, vector<8x32xf32>
      %414 = vector.shape_cast %413 : vector<8x32xf32> to vector<8x1x32xf32>
      %c0_129 = arith.constant 0 : index
      %c0_130 = arith.constant 0 : index
      %c6 = arith.constant 6 : index
      %c0_131 = arith.constant 0 : index
      %415 = vector.load %arg7[%c0_129, %c0_130, %c6, %c0_131] : memref<1x8x8x32xf32, #tpu.memory_space<vmem>>, vector<1x8x1x32xf32>
      %416 = vector.shape_cast %415 : vector<1x8x1x32xf32> to vector<8x1x32xf32>
      %417 = vector.shape_cast %414 : vector<8x1x32xf32> to vector<1x8x1x32xf32>
      tpu.vector_store %arg7[%c0_129, %c0_130, %c6, %c0_131], %417 {strides = array<i32>} : memref<1x8x8x32xf32, #tpu.memory_space<vmem>>, vector<1x8x1x32xf32>,
      %c7_i32 = arith.constant 7 : i32
      %418 = arith.addi %4, %c7_i32 : i32
      %419 = vector.broadcast %418 : i32 to vector<8x1xi32>
      %420 = arith.cmpi slt, %23, %419 : vector<8x1xi32>
      %cst_132 = arith.constant 0.000000e+00 : f32
      %421 = vector.shape_cast %420 : vector<8x1xi1> to vector<8x1xi1>
      %422 = vector.broadcast %421 : vector<8x1xi1> to vector<8x32xi1>
      %423 = vector.broadcast %cst_132 : f32 to vector<8x32xf32>
      %424 = arith.select %422, %407, %423 : vector<8x32xi1>, vector<8x32xf32>
      %cst_133 = arith.constant 0.000000e+00 : f32
      %425 = vector.shape_cast %420 : vector<8x1xi1> to vector<8x1xi1>
      %426 = vector.broadcast %425 : vector<8x1xi1> to vector<8x32xi1>
      %427 = vector.broadcast %cst_133 : f32 to vector<8x32xf32>
      %428 = arith.select %426, %405, %427 : vector<8x32xi1>, vector<8x32xf32>
      %cst_134 = arith.constant dense<0.000000e+00> : vector<8x128xf32>
      %429 = tpu.matmul %424, %20, %cst_134 {dimension_numbers = #tpu.dot_dimension_numbers<[1], [0], [0], [1], [0, 0, 1, 1], [], []>} : vector<8x32xf32>, vector<32x128xf32>, vector<8x128xf32> -> vector<8x128xf32>
      %430 = vector.extract_strided_slice %19 {offsets = [7, 0], sizes = [1, 128], strides = [1, 1]} : vector<8x128xf32> to vector<1x128xf32>
      %431 = vector.broadcast %430 : vector<1x128xf32> to vector<8x128xf32>
      %432 = arith.addf %429, %431 : vector<8x128xf32>
      %433 = vector.extract_strided_slice %432 {offsets = [0, 0], sizes = [8, 32], strides = [1, 1]} : vector<8x128xf32> to vector<8x32xf32>
      %cst_135 = arith.constant 5.000000e-01 : f32
      %434 = vector.broadcast %cst_135 : f32 to vector<8x32xf32>
      %435 = arith.mulf %434, %433 : vector<8x32xf32>
      %436 = math.tanh %435 : vector<8x32xf32>
      %cst_136 = arith.constant 1.000000e+00 : f32
      %437 = vector.broadcast %cst_136 : f32 to vector<8x32xf32>
      %438 = arith.addf %436, %437 : vector<8x32xf32>
      %cst_137 = arith.constant 5.000000e-01 : f32
      %439 = vector.broadcast %cst_137 : f32 to vector<8x32xf32>
      %440 = arith.mulf %439, %438 : vector<8x32xf32>
      %441 = vector.extract_strided_slice %432 {offsets = [0, 32], sizes = [8, 32], strides = [1, 1]} : vector<8x128xf32> to vector<8x32xf32>
      %cst_138 = arith.constant 5.000000e-01 : f32
      %442 = vector.broadcast %cst_138 : f32 to vector<8x32xf32>
      %443 = arith.mulf %442, %441 : vector<8x32xf32>
      %444 = math.tanh %443 : vector<8x32xf32>
      %cst_139 = arith.constant 1.000000e+00 : f32
      %445 = vector.broadcast %cst_139 : f32 to vector<8x32xf32>
      %446 = arith.addf %444, %445 : vector<8x32xf32>
      %cst_140 = arith.constant 5.000000e-01 : f32
      %447 = vector.broadcast %cst_140 : f32 to vector<8x32xf32>
      %448 = arith.mulf %447, %446 : vector<8x32xf32>
      %449 = vector.extract_strided_slice %432 {offsets = [0, 64], sizes = [8, 32], strides = [1, 1]} : vector<8x128xf32> to vector<8x32xf32>
      %450 = math.tanh %449 : vector<8x32xf32>
      %451 = vector.extract_strided_slice %432 {offsets = [0, 96], sizes = [8, 32], strides = [1, 1]} : vector<8x128xf32> to vector<8x32xf32>
      %cst_141 = arith.constant 5.000000e-01 : f32
      %452 = vector.broadcast %cst_141 : f32 to vector<8x32xf32>
      %453 = arith.mulf %452, %451 : vector<8x32xf32>
      %454 = math.tanh %453 : vector<8x32xf32>
      %cst_142 = arith.constant 1.000000e+00 : f32
      %455 = vector.broadcast %cst_142 : f32 to vector<8x32xf32>
      %456 = arith.addf %454, %455 : vector<8x32xf32>
      %cst_143 = arith.constant 5.000000e-01 : f32
      %457 = vector.broadcast %cst_143 : f32 to vector<8x32xf32>
      %458 = arith.mulf %457, %456 : vector<8x32xf32>
      %459 = arith.mulf %448, %428 : vector<8x32xf32>
      %460 = arith.mulf %440, %450 : vector<8x32xf32>
      %461 = arith.addf %459, %460 : vector<8x32xf32>
      %462 = math.tanh %461 : vector<8x32xf32>
      %463 = arith.mulf %458, %462 : vector<8x32xf32>
      %464 = vector.broadcast %418 : i32 to vector<8x1xi32>
      %465 = arith.cmpi sle, %23, %464 : vector<8x1xi32>
      %cst_144 = arith.constant 0.000000e+00 : f32
      %466 = vector.shape_cast %465 : vector<8x1xi1> to vector<8x1xi1>
      %467 = vector.broadcast %466 : vector<8x1xi1> to vector<8x32xi1>
      %468 = vector.broadcast %cst_144 : f32 to vector<8x32xf32>
      %469 = arith.select %467, %463, %468 : vector<8x32xi1>, vector<8x32xf32>
      %470 = vector.shape_cast %469 : vector<8x32xf32> to vector<8x1x32xf32>
      %c0_145 = arith.constant 0 : index
      %c0_146 = arith.constant 0 : index
      %c7 = arith.constant 7 : index
      %c0_147 = arith.constant 0 : index
      %471 = vector.load %arg7[%c0_145, %c0_146, %c7, %c0_147] : memref<1x8x8x32xf32, #tpu.memory_space<vmem>>, vector<1x8x1x32xf32>
      %472 = vector.shape_cast %471 : vector<1x8x1x32xf32> to vector<8x1x32xf32>
      %473 = vector.shape_cast %470 : vector<8x1x32xf32> to vector<1x8x1x32xf32>
      tpu.vector_store %arg7[%c0_145, %c0_146, %c7, %c0_147], %473 {strides = array<i32>} : memref<1x8x8x32xf32, #tpu.memory_space<vmem>>, vector<1x8x1x32xf32>,
      %c0_148 = arith.constant 0 : index
      %c0_149 = arith.constant 0 : index
      %474 = vector.load %arg8[%c0_148, %c0_149] : memref<8x32xf32, #tpu.memory_space<vmem>>, vector<8x32xf32>
      tpu.vector_store %arg8[%c0_148, %c0_149], %463 {strides = array<i32>} : memref<8x32xf32, #tpu.memory_space<vmem>>, vector<8x32xf32>,
      %c0_150 = arith.constant 0 : index
      %c0_151 = arith.constant 0 : index
      %475 = vector.load %arg9[%c0_150, %c0_151] : memref<8x32xf32, #tpu.memory_space<vmem>>, vector<8x32xf32>
      tpu.vector_store %arg9[%c0_150, %c0_151], %461 {strides = array<i32>} : memref<8x32xf32, #tpu.memory_space<vmem>>, vector<8x32xf32>,
    } else {
    }
    return
  }
  func.func @transform_0(%arg0: i32, %arg1: i32, %arg2: i32) -> (i32, i32, i32) {
    %c0_i32 = arith.constant 0 : i32
    %c0_i32_0 = arith.constant 0 : i32
    return %arg0, %arg2, %c0_i32 : i32, i32, i32
  }
  func.func @transform_1(%arg0: i32, %arg1: i32, %arg2: i32) -> (i32, i32) {
    %c0_i32 = arith.constant 0 : i32
    %c0_i32_0 = arith.constant 0 : i32
    %c0_i32_1 = arith.constant 0 : i32
    return %c0_i32, %c0_i32_0 : i32, i32
  }
  func.func @transform_2(%arg0: i32, %arg1: i32, %arg2: i32) -> (i32, i32) {
    %c0_i32 = arith.constant 0 : i32
    %c0_i32_0 = arith.constant 0 : i32
    %c0_i32_1 = arith.constant 0 : i32
    return %c0_i32, %c0_i32_0 : i32, i32
  }
  func.func @transform_3(%arg0: i32, %arg1: i32, %arg2: i32) -> (i32, i32) {
    %c0_i32 = arith.constant 0 : i32
    %c0_i32_0 = arith.constant 0 : i32
    %c0_i32_1 = arith.constant 0 : i32
    return %c0_i32, %c0_i32_0 : i32, i32
  }
  func.func @transform_4(%arg0: i32, %arg1: i32, %arg2: i32) -> (i32, i32, i32, i32) {
    %c0_i32 = arith.constant 0 : i32
    %c0_i32_0 = arith.constant 0 : i32
    return %arg0, %arg1, %arg2, %c0_i32 : i32, i32, i32, i32
  }
}

</mosaic_0001>

<llo_original>
// kernel: b1_forward.1
$region0: #{b1_forward.1}
  #allocation0 [shape = 'u32[]', space=smem, size = 0x4, offset = 0x4, fixed_abs, tag = 'smem constant byte address 0x4 - core index']
  #allocation1 [shape = 'u32[144,128]{1,0:T(1,128)}', space=vmem, size = 0x12000, scoped, tag = 'internal scratch']
  #allocation2 [shape = 'f32[8,32]{1,0:T(8,128)}', space=vmem, size = 0x1000, scoped, tag = 'scratch operand']
  #allocation3 [shape = 'f32[8,32]{1,0:T(8,128)}', space=vmem, size = 0x1000, scoped, tag = 'scratch operand']
  %s0 = inlined_call_operand.hbm [shape: f32[2,8,16], index: 0, kind: input, shape index: {}]
  %s1 = inlined_call_operand.hbm [shape: f32[16,128], index: 1, kind: input, shape index: {}]
  %s2 = inlined_call_operand.hbm [shape: f32[32,128], index: 2, kind: input, shape index: {}]
  %s3 = inlined_call_operand.vmem [shape: f32[1,128], index: 3, kind: input, shape index: {}]
  %s4 = inlined_call_operand.hbm [shape: f32[2,8,8,32], index: 4, kind: output, shape index: {}]
  %s5 = sld [smem:[#allocation0]]
  $region73: #{b1_forward.1} parent=0
    _
  %s7 = ssub.s32 1, %s5
  %s8 = scalar_select 0, %s7, %s5
  $region1: #{b1_forward.1} parent=0
    #allocation4 [shape = 'u8[8192]{0}', space=vmem, size = 0x2000, scoped, tag = 'input window, operand 0']
    #allocation5 [shape = 's32[2]{0}', space=sflag, size = 0x8, scoped, tag = 'scoped memory for b1_forward.1']
    #allocation6 [shape = 's32[2]{0}', space=sflag, size = 0x8, scoped, tag = 'scoped memory for b1_forward.1']
    #allocation7 [shape = 'u8[8192]{0}', space=vmem, size = 0x2000, scoped, tag = 'input window, operand 1, single buffered']
    #allocation8 [shape = 's32[1]{0}', space=sflag, size = 0x4, scoped, tag = 'scoped memory for b1_forward.1']
    #allocation9 [shape = 'u8[16384]{0}', space=vmem, size = 0x4000, scoped, tag = 'input window, operand 2, single buffered']
    #allocation10 [shape = 'u8[65536]{0}', space=vmem, size = 0x10000, scoped, tag = 'output window, operand 0']
    %9 = vsyncpa [#allocation5], 0
    %s10 = scalar_lea.sflag [#allocation5], 1
    %11 = vsyncpa %s10, 0
    %12 = vsyncpa [#allocation8], 0
    %13 = vsyncpa [#allocation6], 0
    %s14 = scalar_lea.sflag [#allocation6], 1
    %15 = vsyncpa %s14, 0
    loop: start=0, step=1, limit=4
    $region2: #{b1_forward.1} parent=1 // loop_pre_header
      _
    $region3: #{b1_forward.1} parent=1 // loop_header
      %s17 = sphi 0, %s21
      %p18 = scmp.ge.s32.totalorder %s17, 4
      %s24 = sphi 0, %s43
      %s25 = sphi 0, %s39
      %s26 = sphi 0, %s35
      %s27 = sphi 0, %s24
      %s28 = sphi 0, %s25
      %s29 = sphi 0, %s26
      %s30 = sphi 0, %s27
      %s31 = sphi 0, %s28
      %s32 = sphi 0, %s29
      %s48 = sphi 0, %s50
      %s51 = sphi 0, %s48
      %s52 = sphi 0, %s51
      %s68 = sphi 0, %s52
      %s72 = sphi 0, %s72
      %s74 = sphi 0, %s72
      %s75 = sphi 0, %s74
      %s89 = sphi 0, %s75
      %s93 = sphi 0, %s93
      %s95 = sphi 0, %s93
      %s96 = sphi 0, %s95
      %s110 = sphi 0, %s96
      %s114 = sphi 0, %s114
      %s116 = sphi 0, %s114
      %s117 = sphi 0, %s116
      %s131 = sphi 0, %s117
      %s141 = sphi 0, %s143
      %s144 = sphi 0, %s141
      %s145 = sphi 0, %s144
      %s161 = sphi 0, %s145
    $region4: #{b1_forward.1} parent=1 // loop_header_branch
      %20 = sbr.rel (%p18) target = $region8
    $region5: #{b1_forward.1} parent=1 // loop_body
      %s22 = ssub.s32 %s17, 1
      %s23 = ssub.s32 %s17, 2
      %s33 = sadd.s32 1, %s26
      %p34 = scmp.ge.s32.totalorder %s33, 1
      %s35 = scalar_select %p34, 0, %s33
      %s36 = sadd.s32 1, %s25
      %s37 = scalar_select %p34, %s36, %s25
      %p38 = scmp.ge.s32.totalorder %s37, 1
      %s39 = scalar_select %p38, 0, %s37
      %s40 = sadd.s32 1, %s24
      %s41 = scalar_select %p38, %s40, %s24
      %p42 = scmp.ge.s32.totalorder %s41, 2
      %s43 = scalar_select %p42, 0, %s41
      %s44 = ssub.s32 %s24, %s43
      %s45 = ssub.s32 %s26, %s35
      %s46 = sor.u32 %s44, %s45
      %p47 = scmp.eq.s32.totalorder %s46, 0
      %s49 = sadd.s32 %s48, 1
      %s50 = scalar_select %p47, %s48, %s49
      %p53 = pneg %p47
      %p54 = scmp.eq.s32.totalorder %s17, 1
      %p55 = por %p53, %p54
      %p56 = scmp.ne.s32.totalorder %s48, %s51
      %p57 = scmp.eq.s32.totalorder %s17, 0
      %p58 = por %p56, %p57
      %p59 = scmp.ne.s32.totalorder %s48, %s51
      %p60 = scmp.eq.s32.totalorder %s22, 1
      %p61 = por %p59, %p60
      %p62 = scmp.ne.s32.totalorder %s51, %s52
      %p63 = scmp.eq.s32.totalorder %s22, 0
      %p64 = por %p62, %p63
      %p65 = scmp.ne.s32.totalorder %s51, %s52
      %p66 = scmp.eq.s32.totalorder %s23, 1
      %p67 = por %p65, %p66
      %p69 = scmp.ne.s32.totalorder %s52, %s68
      %p70 = scmp.eq.s32.totalorder %s23, 0
      %p71 = por %p69, %p70
      %s73 = sadd.s32 %s72, 1
      %p76 = scmp.eq.s32.totalorder %s17, 1
      %p77 = scmp.ne.s32.totalorder %s72, %s74
      %p78 = scmp.eq.s32.totalorder %s17, 0
      %p79 = por %p77, %p78
      %p80 = scmp.ne.s32.totalorder %s72, %s74
      %p81 = scmp.eq.s32.totalorder %s22, 1
      %p82 = por %p80, %p81
      %p83 = scmp.ne.s32.totalorder %s74, %s75
      %p84 = scmp.eq.s32.totalorder %s22, 0
      %p85 = por %p83, %p84
      %p86 = scmp.ne.s32.totalorder %s74, %s75
      %p87 = scmp.eq.s32.totalorder %s23, 1
      %p88 = por %p86, %p87
      %p90 = scmp.ne.s32.totalorder %s75, %s89
      %p91 = scmp.eq.s32.totalorder %s23, 0
      %p92 = por %p90, %p91
      %s94 = sadd.s32 %s93, 1
      %p97 = scmp.eq.s32.totalorder %s17, 1
      %p98 = scmp.ne.s32.totalorder %s93, %s95
      %p99 = scmp.eq.s32.totalorder %s17, 0
      %p100 = por %p98, %p99
      %p101 = scmp.ne.s32.totalorder %s93, %s95
      %p102 = scmp.eq.s32.totalorder %s22, 1
      %p103 = por %p101, %p102
      %p104 = scmp.ne.s32.totalorder %s95, %s96
      %p105 = scmp.eq.s32.totalorder %s22, 0
      %p106 = por %p104, %p105
      %p107 = scmp.ne.s32.totalorder %s95, %s96
      %p108 = scmp.eq.s32.totalorder %s23, 1
      %p109 = por %p107, %p108
      %p111 = scmp.ne.s32.totalorder %s96, %s110
      %p112 = scmp.eq.s32.totalorder %s23, 0
      %p113 = por %p111, %p112
      %s115 = sadd.s32 %s114, 1
      %p118 = scmp.eq.s32.totalorder %s17, 1
      %p119 = scmp.ne.s32.totalorder %s114, %s116
      %p120 = scmp.eq.s32.totalorder %s17, 0
      %p121 = por %p119, %p120
      %p122 = scmp.ne.s32.totalorder %s114, %s116
      %p123 = scmp.eq.s32.totalorder %s22, 1
      %p124 = por %p122, %p123
      %p125 = scmp.ne.s32.totalorder %s116, %s117
      %p126 = scmp.eq.s32.totalorder %s22, 0
      %p127 = por %p125, %p126
      %p128 = scmp.ne.s32.totalorder %s116, %s117
      %p129 = scmp.eq.s32.totalorder %s23, 1
      %p130 = por %p128, %p129
      %p132 = scmp.ne.s32.totalorder %s117, %s131
      %p133 = scmp.eq.s32.totalorder %s23, 0
      %p134 = por %p132, %p133
      %s135 = ssub.s32 %s24, %s43
      %s136 = ssub.s32 %s25, %s39
      %s137 = sor.u32 %s135, %s136
      %s138 = ssub.s32 %s26, %s35
      %s139 = sor.u32 %s137, %s138
      %p140 = scmp.eq.s32.totalorder %s139, 0
      %s142 = sadd.s32 %s141, 1
      %s143 = scalar_select %p140, %s141, %s142
      %p146 = pneg %p140
      %p147 = scmp.eq.s32.totalorder %s17, 1
      %p148 = por %p146, %p147
      %p149 = scmp.ne.s32.totalorder %s141, %s144
      %p150 = scmp.eq.s32.totalorder %s17, 0
      %p151 = por %p149, %p150
      %p152 = scmp.ne.s32.totalorder %s141, %s144
      %p153 = scmp.eq.s32.totalorder %s22, 1
      %p154 = por %p152, %p153
      %p155 = scmp.ne.s32.totalorder %s144, %s145
      %p156 = scmp.eq.s32.totalorder %s22, 0
      %p157 = por %p155, %p156
      %p158 = scmp.ne.s32.totalorder %s144, %s145
      %p159 = scmp.eq.s32.totalorder %s23, 1
      %p160 = por %p158, %p159
      %p162 = scmp.ne.s32.totalorder %s145, %s161
      %p163 = scmp.eq.s32.totalorder %s23, 0
      %p164 = por %p162, %p163
      %p165 = scmp.le.s32.totalorder 1, %s17
      %p166 = scmp.lt.s32.totalorder %s17, 3
      %p167 = pnand %p165, %p166
      %p168 = pneg %p167
      // Predicated region
      $region9: #{b1_forward.1} parent=5 // pred_check
        _
      $region10: #{b1_forward.1} parent=5 // pred_check_branch
        %170 = sbr.rel (%p167) target = $region12
      $region11: #{b1_forward.1} parent=5 // pred_region
        %s171 = ssub.s32 %s17, 1
        // Predicated region
        $region13: #{b1_forward.1} parent=11 // pred_check
          %p172 = pneg %p85
        $region14: #{b1_forward.1} parent=11 // pred_check_branch
          %174 = sbr.rel (%p172) target = $region16
        $region15: #{b1_forward.1} parent=11 // pred_region
          %s176 = ssub.s32 256, 256
          %177 = vsyncadd [#allocation8], %s176
          %s178 = sshll.u32 [#allocation7], 4
          %s179 = int_to_ptr.vmem [resolvable:$true] %s178
          %184 = dma.hbm_to_vmem [thread:$0]  %s1, 256, %s179, [#allocation8], 128, 128, 8
        $region16: #{b1_forward.1} parent=11 // pred_fallthru
          _
        // Predicated region
        $region17: #{b1_forward.1} parent=11 // pred_check
          %p185 = pneg %p106
        $region18: #{b1_forward.1} parent=11 // pred_check_branch
          %187 = sbr.rel (%p185) target = $region20
        $region19: #{b1_forward.1} parent=11 // pred_region
          %s189 = ssub.s32 512, 512
          %190 = vsyncadd [#allocation8], %s189
          %s191 = sshll.u32 [#allocation9], 4
          %s192 = int_to_ptr.vmem [resolvable:$true] %s191
          %197 = dma.hbm_to_vmem [thread:$0]  %s2, 512, %s192, [#allocation8], 128, 128, 8
        $region20: #{b1_forward.1} parent=11 // pred_fallthru
          _
        // Predicated region
        $region21: #{b1_forward.1} parent=11 // pred_check
          %p198 = pneg %p127
        $region22: #{b1_forward.1} parent=11 // pred_check_branch
          %200 = sbr.rel (%p198) target = $region24
        $region23: #{b1_forward.1} parent=11 // pred_region
          _
        $region24: #{b1_forward.1} parent=11 // pred_fallthru
          _
      $region12: #{b1_forward.1} parent=5 // pred_fallthru
        _
      %p201 = scmp.lt.s32.totalorder %s17, 2
      // Predicated region
      $region25: #{b1_forward.1} parent=5 // pred_check
        %p202 = pneg %p201
      $region26: #{b1_forward.1} parent=5 // pred_check_branch
        %204 = sbr.rel (%p202) target = $region28
      $region27: #{b1_forward.1} parent=5 // pred_region
        // Predicated region
        $region29: #{b1_forward.1} parent=27 // pred_check
          %p205 = pneg %p58
        $region30: #{b1_forward.1} parent=27 // pred_check_branch
          %207 = sbr.rel (%p205) target = $region32
        $region31: #{b1_forward.1} parent=27 // pred_region
          %s208 = sand.u32 %s48, 1
          %s209 = scalar_lea.sflag [#allocation5], %s208
          %s210 = sand.u32 %s48, 1
          %s211 = smul.addr %s210, 8
          %s212 = scalar_lea.vmem [#allocation4], %s211
          %s214 = ssub.s32 128, 128
          %215 = vsyncadd %s209, %s214
          %s216 = sadd.s32 %s26, %s24
          %s217 = smul.addr %s216, 128
          %s218 = scalar_lea.hbm %s0, %s217
          %s220 = sshll.u32 %s212, 4
          %s221 = int_to_ptr.vmem [resolvable:$true] %s220
          %223 = dma.hbm_to_vmem [thread:$0]  %s218, 128, %s221, %s209
        $region32: #{b1_forward.1} parent=27 // pred_fallthru
          _
      $region28: #{b1_forward.1} parent=5 // pred_fallthru
        _
      %p224 = scmp.le.s32.totalorder 1, %s17
      %p225 = scmp.lt.s32.totalorder %s17, 3
      %p226 = pnand %p224, %p225
      %p227 = pneg %p226
      // Predicated region
      $region33: #{b1_forward.1} parent=5 // pred_check
        _
      $region34: #{b1_forward.1} parent=5 // pred_check_branch
        %229 = sbr.rel (%p226) target = $region36
      $region35: #{b1_forward.1} parent=5 // pred_region
        %s230 = ssub.s32 %s17, 1
        %s231 = sand.u32 %s51, 1
        %s232 = scalar_lea.sflag [#allocation5], %s231
        %s233 = sand.u32 %s51, 1
        %s234 = smul.addr %s233, 8
        %s235 = scalar_lea.vmem [#allocation4], %s234
        // Predicated region
        $region37: #{b1_forward.1} parent=35 // pred_check
          %p236 = pneg %p64
        $region38: #{b1_forward.1} parent=35 // pred_check_branch
          %238 = sbr.rel (%p236) target = $region40
        $region39: #{b1_forward.1} parent=35 // pred_region
          %239 = dma.done %s232, 128
        $region40: #{b1_forward.1} parent=35 // pred_fallthru
          _
        // Predicated region
        $region41: #{b1_forward.1} parent=35 // pred_check
          %p240 = pneg %p85
        $region42: #{b1_forward.1} parent=35 // pred_check_branch
          %242 = sbr.rel (%p240) target = $region44
        $region43: #{b1_forward.1} parent=35 // pred_region
          %243 = dma.done [#allocation8], 256
        $region44: #{b1_forward.1} parent=35 // pred_fallthru
          _
        // Predicated region
        $region45: #{b1_forward.1} parent=35 // pred_check
          %p244 = pneg %p106
        $region46: #{b1_forward.1} parent=35 // pred_check_branch
          %246 = sbr.rel (%p244) target = $region48
        $region47: #{b1_forward.1} parent=35 // pred_region
          %247 = dma.done [#allocation8], 512
        $region48: #{b1_forward.1} parent=35 // pred_fallthru
          _
        %s248 = sand.u32 %s51, 1
        %s249 = scalar_lea.sflag [#allocation5], %s248
        %s250 = sand.u32 %s51, 1
        %s251 = smul.addr %s250, 8
        %s252 = scalar_lea.vmem [#allocation4], %s251
        %p253 = pneg %p64
        %p254 = pneg %p61
        %p255 = pneg %p85
        %p256 = pneg %p82
        %p257 = pneg %p106
        %p258 = pneg %p103
        %p259 = pneg %p127
        %p260 = pneg %p124
        %p261 = pneg %p157
        %p262 = pneg %p154
        %s263 = sand.u32 %s144, 1
        %s264 = scalar_lea.sflag [#allocation6], %s263
        %s265 = sand.u32 %s144, 1
        %s266 = smul.addr %s265, 64
        %s267 = scalar_lea.vmem [#allocation10], %s266
        %s268 = smul.u32 8, %s28
        %p269 = scmp.eq.s32.totalorder %s29, 0
        // Predicated region
        $region49: #{b1_forward.1} parent=35 // pred_check
          %p270 = pneg %p269
        $region50: #{b1_forward.1} parent=35 // pred_check_branch
          %272 = sbr.rel (%p270) target = $region52
        $region51: #{b1_forward.1} parent=35 // pred_region
          %vm273 = vcmask 261120
          %274 = vst.msk [vmem:[#allocation2] sm:$0xff] %vm273, 0.0
          %275 = vst.msk [vmem:[#allocation3] sm:$0xff] %vm273, 0.0
        $region52: #{b1_forward.1} parent=35 // pred_fallthru
          _
        %s276 = smul.u32 %s28, 8
        %s277 = smul.u32 %s29, 8
        %s278 = sadd.s32 %s277, 7
        %p279 = scmp.lt.s32.totalorder %s278, %s276
        // Predicated region
        $region53: #{b1_forward.1} parent=35 // pred_check
          %p280 = pneg %p279
        $region54: #{b1_forward.1} parent=35 // pred_check_branch
          %282 = sbr.rel (%p280) target = $region56
        $region55: #{b1_forward.1} parent=35 // pred_region
          %vm283 = vcmask 261120
          %284 = vst.msk [vmem:[%s267] sm:$0xff] %vm283, 0.0
          %285 = vst.msk [vmem:[%s267 + $0x8] sm:$0xff] %vm283, 0.0
          %286 = vst.msk [vmem:[%s267 + $0x10] sm:$0xff] %vm283, 0.0
          %287 = vst.msk [vmem:[%s267 + $0x18] sm:$0xff] %vm283, 0.0
          %288 = vst.msk [vmem:[%s267 + $0x20] sm:$0xff] %vm283, 0.0
          %289 = vst.msk [vmem:[%s267 + $0x28] sm:$0xff] %vm283, 0.0
          %290 = vst.msk [vmem:[%s267 + $0x30] sm:$0xff] %vm283, 0.0
          %291 = vst.msk [vmem:[%s267 + $0x38] sm:$0xff] %vm283, 0.0
        $region56: #{b1_forward.1} parent=35 // pred_fallthru
          _
        %p292 = scmp.ge.s32.totalorder %s278, %s276
        // Predicated region
        $region57: #{b1_forward.1} parent=35 // pred_check
          %p293 = pneg %p292
        $region58: #{b1_forward.1} parent=35 // pred_check_branch
          %295 = sbr.rel (%p293) target = $region60
        $region59: #{b1_forward.1} parent=35 // pred_region
          %v296 = vld [vmem:[%s235] sm:$0xff]
          %v297 = vld [vmem:[#allocation7] sm:$0xff]
          %v298 = vld [vmem:[#allocation7 + $0x8] sm:$0xff]
          %v299 = vld [vmem:[%s3] sm:$0x1]
          %v301 = vlaneseq
          %v302 = vshrl.u32 %v301, 7
          %v303 = vsub.s32 0, %v302
          %v304 = vrot.slane %v299, %v303
          %vm306 = vcmask 130048
          %v308 = vsel %vm306, %v296, 0
          %310 = vmatprep.subr.mxu0 0.0
          %311 = vmatpush1.msra.mxu0 %v297
          %312 = vmatprep.subr.mxu0 0.0
          %313 = vmatpush1.msra.mxu0 %v298
          %314 = vmatprep.subr.mxu0 0.0
          %315 = vmatpush1.msra.mxu0 0.0
          %316 = vmatprep.subr.mxu0 0.0
          %317 = vmatpush1.msra.mxu0 0.0
          %318 = vmatprep.subr.mxu0 0.0
          %319 = vmatpush1.msra.mxu0 0.0
          %320 = vmatprep.subr.mxu0 0.0
          %321 = vmatpush1.msra.mxu0 0.0
          %322 = vmatprep.subr.mxu0 0.0
          %323 = vmatpush1.msra.mxu0 0.0
          %324 = vmatprep.subr.mxu0 0.0
          %325 = vmatpush1.msra.mxu0 0.0
          %326 = vmatprep.subr.mxu0 0.0
          %327 = vmatpush1.msra.mxu0 0.0
          %328 = vmatprep.subr.mxu0 0.0
          %329 = vmatpush1.msra.mxu0 0.0
          %330 = vmatprep.subr.mxu0 0.0
          %331 = vmatpush1.msra.mxu0 0.0
          %332 = vmatprep.subr.mxu0 0.0
          %333 = vmatpush1.msra.mxu0 0.0
          %334 = vmatprep.subr.mxu0 0.0
          %335 = vmatpush1.msra.mxu0 0.0
          %336 = vmatprep.subr.mxu0 0.0
          %337 = vmatpush1.msra.mxu0 0.0
          %338 = vmatprep.subr.mxu0 0.0
          %339 = vmatpush1.msra.mxu0 0.0
          %340 = vmatprep.subr.mxu0 0.0
          %341 = vmatpush1.msra.mxu0 0.0
          %342 = vmatprep.subr.mxu0 0.0
          %343 = vmatpush1.msra.mxu0 0.0
          %344 = vmatprep.subr.mxu0 0.0
          %345 = vmatpush1.msra.mxu0 0.0
          %346 = vmatprep.subr.mxu0 0.0
          %347 = vmatpush1.msra.mxu0 0.0
          %348 = vmatprep.subr.mxu0 0.0
          %349 = vmatpush1.msra.mxu0 0.0
          %350 = vmatprep.subr.mxu0 0.0
          %351 = vmatpush1.msra.mxu0 0.0
          %352 = vmatprep.subr.mxu0 0.0
          %353 = vmatpush1.msra.mxu0 0.0
          %354 = vmatprep.subr.mxu0 0.0
          %355 = vmatpush1.msra.mxu0 0.0
          %356 = vmatprep.subr.mxu0 0.0
          %357 = vmatpush1.msra.mxu0 0.0
          %358 = vmatprep.subr.mxu0 0.0
          %359 = vmatpush1.msra.mxu0 0.0
          %360 = vmatprep.subr.mxu0 0.0
          %361 = vmatpush1.msra.mxu0 0.0
          %362 = vmatprep.subr.mxu0 0.0
          %363 = vmatpush1.msra.mxu0 0.0
          %364 = vmatprep.subr.mxu0 0.0
          %365 = vmatpush1.msra.mxu0 0.0
          %366 = vmatprep.subr.mxu0 0.0
          %367 = vmatpush1.msra.mxu0 0.0
          %368 = vmatprep.subr.mxu0 0.0
          %369 = vmatpush1.msra.mxu0 0.0
          %370 = vmatprep.subr.mxu0 0.0
          %371 = vmatpush1.msra.mxu0 0.0
          %372 = vmatprep.subr.mxu0 0.0
          %373 = vmatpush1.msra.mxu0 0.0
          %374 = vmatprep.mubr.f32.mxu0 0.0
          %375 = vmatmul.mubr.f32.gmra.mrb[0].mxu0 %v308
          %v376 = vpop.f32.mrb[0].mxu0
          %v377 = vadd.f32 %v304, %v376
          %v378 = vpop.f32.mrb[0].mxu0
          %379 = vdwg.mxu0
          %v380 = vld [vmem:[#allocation9] sm:$0xff]
          %v381 = vld [vmem:[#allocation9 + $0x8] sm:$0xff]
          %v382 = vld [vmem:[#allocation9 + $0x10] sm:$0xff]
          %v383 = vld [vmem:[#allocation9 + $0x18] sm:$0xff]
          %v384 = vlaneseq
          %v385 = vshrl.u32 %v384, 7
          %v386 = vstv %s276
          %v387 = vadd.s32 %v386, %v385
          %v388 = vld [vmem:[#allocation2] sm:$0xff]
          %v389 = vld [vmem:[#allocation3] sm:$0xff]
          %v390 = vstv %s277
          %vm391 = vcmp.lt.s32.totalorder %v387, %v390
          %v392 = vsel %vm391, 1, 0
          %vm393 = vcmp.eq.s32.totalorder %v392, 1
          %v394 = vsel %vm393, %v388, 0.0
          %v395 = vsel %vm393, %v389, 0.0
          %v396 = vlaneseq
          %v397 = vshrl.u32 %v396, 7
          %v398 = vsub.s32 0, %v397
          %v399 = vrot.slane %v377, %v398
          %vm400 = vcmask 261120
          %v402 = vsel %vm400, %v394, 0
          %404 = vmatprep.subr.mxu0 0.0
          %405 = vmatpush1.msra.mxu0 %v380
          %406 = vmatprep.subr.mxu0 0.0
          %407 = vmatpush1.msra.mxu0 %v381
          %408 = vmatprep.subr.mxu0 0.0
          %409 = vmatpush1.msra.mxu0 %v382
          %410 = vmatprep.subr.mxu0 0.0
          %411 = vmatpush1.msra.mxu0 %v383
          %412 = vmatprep.subr.mxu0 0.0
          %413 = vmatpush1.msra.mxu0 0.0
          %414 = vmatprep.subr.mxu0 0.0
          %415 = vmatpush1.msra.mxu0 0.0
          %416 = vmatprep.subr.mxu0 0.0
          %417 = vmatpush1.msra.mxu0 0.0
          %418 = vmatprep.subr.mxu0 0.0
          %419 = vmatpush1.msra.mxu0 0.0
          %420 = vmatprep.subr.mxu0 0.0
          %421 = vmatpush1.msra.mxu0 0.0
          %422 = vmatprep.subr.mxu0 0.0
          %423 = vmatpush1.msra.mxu0 0.0
          %424 = vmatprep.subr.mxu0 0.0
          %425 = vmatpush1.msra.mxu0 0.0
          %426 = vmatprep.subr.mxu0 0.0
          %427 = vmatpush1.msra.mxu0 0.0
          %428 = vmatprep.subr.mxu0 0.0
          %429 = vmatpush1.msra.mxu0 0.0
          %430 = vmatprep.subr.mxu0 0.0
          %431 = vmatpush1.msra.mxu0 0.0
          %432 = vmatprep.subr.mxu0 0.0
          %433 = vmatpush1.msra.mxu0 0.0
          %434 = vmatprep.subr.mxu0 0.0
          %435 = vmatpush1.msra.mxu0 0.0
          %436 = vmatprep.subr.mxu0 0.0
          %437 = vmatpush1.msra.mxu0 0.0
          %438 = vmatprep.subr.mxu0 0.0
          %439 = vmatpush1.msra.mxu0 0.0
          %440 = vmatprep.subr.mxu0 0.0
          %441 = vmatpush1.msra.mxu0 0.0
          %442 = vmatprep.subr.mxu0 0.0
          %443 = vmatpush1.msra.mxu0 0.0
          %444 = vmatprep.subr.mxu0 0.0
          %445 = vmatpush1.msra.mxu0 0.0
          %446 = vmatprep.subr.mxu0 0.0
          %447 = vmatpush1.msra.mxu0 0.0
          %448 = vmatprep.subr.mxu0 0.0
          %449 = vmatpush1.msra.mxu0 0.0
          %450 = vmatprep.subr.mxu0 0.0
          %451 = vmatpush1.msra.mxu0 0.0
          %452 = vmatprep.subr.mxu0 0.0
          %453 = vmatpush1.msra.mxu0 0.0
          %454 = vmatprep.subr.mxu0 0.0
          %455 = vmatpush1.msra.mxu0 0.0
          %456 = vmatprep.subr.mxu0 0.0
          %457 = vmatpush1.msra.mxu0 0.0
          %458 = vmatprep.subr.mxu0 0.0
          %459 = vmatpush1.msra.mxu0 0.0
          %460 = vmatprep.subr.mxu0 0.0
          %461 = vmatpush1.msra.mxu0 0.0
          %462 = vmatprep.subr.mxu0 0.0
          %463 = vmatpush1.msra.mxu0 0.0
          %464 = vmatprep.subr.mxu0 0.0
          %465 = vmatpush1.msra.mxu0 0.0
          %466 = vmatprep.subr.mxu0 0.0
          %467 = vmatpush1.msra.mxu0 0.0
          %468 = vmatprep.mubr.f32.mxu0 0.0
          %469 = vmatmul.mubr.f32.gmra.mrb[0].mxu0 %v402
          %v470 = vpop.f32.mrb[0].mxu0
          %v471 = vadd.f32 %v399, %v470
          %v472 = vpop.f32.mrb[0].mxu0
          %473 = vdwg.mxu0
          %v474 = vmul.f32 %v471, 0.5
          %v475 = vtanh.pop %v474
          %v476 = vadd.f32 %v475, 1.0
          %v477 = vmul.f32 %v476, 0.5
          %v478 = vtanh.pop %v471
          %480 = vrot.lane.b32.xlu0 %v395, 32
          %v481 = vpop.permute.xlu0 %480
          %v483 = vmul.f32 %v477, %v481
          %485 = vrot.lane.b32.xlu0 %v478, 64
          %v486 = vpop.permute.xlu0 %485
          %v488 = vmul.f32 %v477, %v486
          %490 = vrot.lane.b32.xlu0 %v488, 32
          %v491 = vpop.permute.xlu0 %490
          %v493 = vadd.f32 %v483, %v491
          %v494 = vtanh.pop %v493
          %496 = vrot.lane.b32.xlu0 %v494, 64
          %v497 = vpop.permute.xlu0 %496
          %v499 = vmul.f32 %v477, %v497
          %vm500 = vcmp.le.s32.totalorder %v387, %v390
          %v501 = vsel %vm500, 1, 0
          %vm502 = vcmp.eq.s32.totalorder %v501, 1
          %v503 = vsel %vm502, %v499, 0.0
          %v505 = vcombine.high %v503, %v503
          %v507 = vunpack.c.l.s4 1966171168
          %v508 = vunpack.c.0.s8 %v507
          %v509 = vlaneseq
          %v510 = vshrl.u32 %v509, 7
          %v511 = vsub.s32 %v508, %v510
          %v512 = vrot.slane %v503, %v511
          %v514 = vunpack.c.l.s4 1966171168
          %v515 = vunpack.c.0.s8 %v514
          %v516 = vlaneseq
          %v517 = vshrl.u32 %v516, 7
          %v518 = vsub.s32 %v515, %v517
          %v519 = vrot.slane %v505, %v518
          %v520 = vcombine.high %v512, %v512
          %v521 = vcombine.high %v519, %v519
          %v523 = vunpack.c.l.s4 1966171168
          %v524 = vunpack.c.0.s8 %v523
          %v525 = vlaneseq
          %v526 = vshrl.u32 %v525, 7
          %v527 = vsub.s32 %v524, %v526
          %v528 = vrot.slane %v512, %v527
          %v530 = vunpack.c.l.s4 1966171168
          %v531 = vunpack.c.0.s8 %v530
          %v532 = vlaneseq
          %v533 = vshrl.u32 %v532, 7
          %v534 = vsub.s32 %v531, %v533
          %v535 = vrot.slane %v519, %v534
          %v537 = vunpack.c.l.s4 1966171168
          %v538 = vunpack.c.0.s8 %v537
          %v539 = vlaneseq
          %v540 = vshrl.u32 %v539, 7
          %v541 = vsub.s32 %v538, %v540
          %v542 = vrot.slane %v520, %v541
          %v544 = vunpack.c.l.s4 1966171168
          %v545 = vunpack.c.0.s8 %v544
          %v546 = vlaneseq
          %v547 = vshrl.u32 %v546, 7
          %v548 = vsub.s32 %v545, %v547
          %v549 = vrot.slane %v521, %v548
          %v550 = vcombine.high %v528, %v528
          %v551 = vcombine.high %v535, %v535
          %v552 = vcombine.high %v542, %v542
          %v553 = vcombine.high %v549, %v549
          %v554 = vlaneseq
          %v555 = vshrl.u32 %v554, 7
          %v556 = vsub.s32 0, %v555
          %v557 = vrot.slane %v528, %v556
          %v558 = vlaneseq
          %v559 = vshrl.u32 %v558, 7
          %v560 = vsub.s32 0, %v559
          %v561 = vrot.slane %v542, %v560
          %v562 = vlaneseq
          %v563 = vshrl.u32 %v562, 7
          %v564 = vsub.s32 0, %v563
          %v565 = vrot.slane %v550, %v564
          %v566 = vlaneseq
          %v567 = vshrl.u32 %v566, 7
          %v568 = vsub.s32 0, %v567
          %v569 = vrot.slane %v552, %v568
          %v570 = vlaneseq
          %v571 = vshrl.u32 %v570, 7
          %v572 = vsub.s32 0, %v571
          %v573 = vrot.slane %v535, %v572
          %v574 = vlaneseq
          %v575 = vshrl.u32 %v574, 7
          %v576 = vsub.s32 0, %v575
          %v577 = vrot.slane %v549, %v576
          %v578 = vlaneseq
          %v579 = vshrl.u32 %v578, 7
          %v580 = vsub.s32 0, %v579
          %v581 = vrot.slane %v551, %v580
          %v582 = vlaneseq
          %v583 = vshrl.u32 %v582, 7
          %v584 = vsub.s32 0, %v583
          %v585 = vrot.slane %v553, %v584
          %586 = vrot.lane.b32.xlu0 %v557, 32
          %v587 = vpop.permute.xlu0 %586
          %588 = vrot.lane.b32.xlu0 %v561, 32
          %v589 = vpop.permute.xlu0 %588
          %590 = vrot.lane.b32.xlu0 %v565, 32
          %v591 = vpop.permute.xlu0 %590
          %592 = vrot.lane.b32.xlu0 %v569, 32
          %v593 = vpop.permute.xlu0 %592
          %594 = vrot.lane.b32.xlu0 %v573, 32
          %v595 = vpop.permute.xlu0 %594
          %596 = vrot.lane.b32.xlu0 %v577, 32
          %v597 = vpop.permute.xlu0 %596
          %598 = vrot.lane.b32.xlu0 %v581, 32
          %v599 = vpop.permute.xlu0 %598
          %600 = vrot.lane.b32.xlu0 %v585, 32
          %v601 = vpop.permute.xlu0 %600
          %vm610 = vcmask 253952
          %611 = vst.msk [vmem:[%s267] sm:$0x1] %vm610, %v587
          %612 = vst.msk [vmem:[%s267 + $0x8] sm:$0x1] %vm610, %v589
          %613 = vst.msk [vmem:[%s267 + $0x10] sm:$0x1] %vm610, %v591
          %614 = vst.msk [vmem:[%s267 + $0x18] sm:$0x1] %vm610, %v593
          %615 = vst.msk [vmem:[%s267 + $0x20] sm:$0x1] %vm610, %v595
          %616 = vst.msk [vmem:[%s267 + $0x28] sm:$0x1] %vm610, %v597
          %617 = vst.msk [vmem:[%s267 + $0x30] sm:$0x1] %vm610, %v599
          %618 = vst.msk [vmem:[%s267 + $0x38] sm:$0x1] %vm610, %v601
          %s619 = sadd.s32 %s277, 1
          %v620 = vstv %s619
          %vm621 = vcmp.lt.s32.totalorder %v387, %v620
          %v622 = vsel %vm621, 1, 0
          %vm623 = vcmp.eq.s32.totalorder %v622, 1
          %v624 = vsel %vm623, %v499, 0.0
          %v625 = vsel %vm623, %v493, 0.0
          %v626 = vlaneseq
          %v627 = vshrl.u32 %v626, 7
          %v628 = vsub.s32 1, %v627
          %v629 = vrot.slane %v377, %v628
          %631 = vrot.lane.b32.xlu0 %v624, 32
          %v632 = vpop.permute.xlu0 %631
          %v633 = vsel %vm400, %v632, 0
          %635 = vmatprep.subr.mxu0 0.0
          %636 = vmatpush1.msra.mxu0 %v380
          %637 = vmatprep.subr.mxu0 0.0
          %638 = vmatpush1.msra.mxu0 %v381
          %639 = vmatprep.subr.mxu0 0.0
          %640 = vmatpush1.msra.mxu0 %v382
          %641 = vmatprep.subr.mxu0 0.0
          %642 = vmatpush1.msra.mxu0 %v383
          %643 = vmatprep.subr.mxu0 0.0
          %644 = vmatpush1.msra.mxu0 0.0
          %645 = vmatprep.subr.mxu0 0.0
          %646 = vmatpush1.msra.mxu0 0.0
          %647 = vmatprep.subr.mxu0 0.0
          %648 = vmatpush1.msra.mxu0 0.0
          %649 = vmatprep.subr.mxu0 0.0
          %650 = vmatpush1.msra.mxu0 0.0
          %651 = vmatprep.subr.mxu0 0.0
          %652 = vmatpush1.msra.mxu0 0.0
          %653 = vmatprep.subr.mxu0 0.0
          %654 = vmatpush1.msra.mxu0 0.0
          %655 = vmatprep.subr.mxu0 0.0
          %656 = vmatpush1.msra.mxu0 0.0
          %657 = vmatprep.subr.mxu0 0.0
          %658 = vmatpush1.msra.mxu0 0.0
          %659 = vmatprep.subr.mxu0 0.0
          %660 = vmatpush1.msra.mxu0 0.0
          %661 = vmatprep.subr.mxu0 0.0
          %662 = vmatpush1.msra.mxu0 0.0
          %663 = vmatprep.subr.mxu0 0.0
          %664 = vmatpush1.msra.mxu0 0.0
          %665 = vmatprep.subr.mxu0 0.0
          %666 = vmatpush1.msra.mxu0 0.0
          %667 = vmatprep.subr.mxu0 0.0
          %668 = vmatpush1.msra.mxu0 0.0
          %669 = vmatprep.subr.mxu0 0.0
          %670 = vmatpush1.msra.mxu0 0.0
          %671 = vmatprep.subr.mxu0 0.0
          %672 = vmatpush1.msra.mxu0 0.0
          %673 = vmatprep.subr.mxu0 0.0
          %674 = vmatpush1.msra.mxu0 0.0
          %675 = vmatprep.subr.mxu0 0.0
          %676 = vmatpush1.msra.mxu0 0.0
          %677 = vmatprep.subr.mxu0 0.0
          %678 = vmatpush1.msra.mxu0 0.0
          %679 = vmatprep.subr.mxu0 0.0
          %680 = vmatpush1.msra.mxu0 0.0
          %681 = vmatprep.subr.mxu0 0.0
          %682 = vmatpush1.msra.mxu0 0.0
          %683 = vmatprep.subr.mxu0 0.0
          %684 = vmatpush1.msra.mxu0 0.0
          %685 = vmatprep.subr.mxu0 0.0
          %686 = vmatpush1.msra.mxu0 0.0
          %687 = vmatprep.subr.mxu0 0.0
          %688 = vmatpush1.msra.mxu0 0.0
          %689 = vmatprep.subr.mxu0 0.0
          %690 = vmatpush1.msra.mxu0 0.0
          %691 = vmatprep.subr.mxu0 0.0
          %692 = vmatpush1.msra.mxu0 0.0
          %693 = vmatprep.subr.mxu0 0.0
          %694 = vmatpush1.msra.mxu0 0.0
          %695 = vmatprep.subr.mxu0 0.0
          %696 = vmatpush1.msra.mxu0 0.0
          %697 = vmatprep.subr.mxu0 0.0
          %698 = vmatpush1.msra.mxu0 0.0
          %699 = vmatprep.mubr.f32.mxu0 0.0
          %700 = vmatmul.mubr.f32.gmra.mrb[0].mxu0 %v633
          %v701 = vpop.f32.mrb[0].mxu0
          %v702 = vadd.f32 %v629, %v701
          %v703 = vpop.f32.mrb[0].mxu0
          %704 = vdwg.mxu0
          %v705 = vmul.f32 %v702, 0.5
          %v706 = vtanh.pop %v705
          %v707 = vadd.f32 %v706, 1.0
          %v708 = vmul.f32 %v707, 0.5
          %v709 = vtanh.pop %v702
          %v710 = vmul.f32 %v708, %v625
          %712 = vrot.lane.b32.xlu0 %v709, 64
          %v713 = vpop.permute.xlu0 %712
          %v715 = vmul.f32 %v708, %v713
          %717 = vrot.lane.b32.xlu0 %v715, 32
          %v718 = vpop.permute.xlu0 %717
          %v720 = vadd.f32 %v710, %v718
          %v721 = vtanh.pop %v720
          %723 = vrot.lane.b32.xlu0 %v721, 64
          %v724 = vpop.permute.xlu0 %723
          %v726 = vmul.f32 %v708, %v724
          %vm727 = vcmp.le.s32.totalorder %v387, %v620
          %v728 = vsel %vm727, 1, 0
          %vm729 = vcmp.eq.s32.totalorder %v728, 1
          %v730 = vsel %vm729, %v726, 0.0
          %v732 = vcombine.high %v730, %v730
          %v734 = vunpack.c.l.s4 1966171168
          %v735 = vunpack.c.0.s8 %v734
          %v736 = vlaneseq
          %v737 = vshrl.u32 %v736, 7
          %v738 = vsub.s32 %v735, %v737
          %v739 = vrot.slane %v730, %v738
          %v741 = vunpack.c.l.s4 1966171168
          %v742 = vunpack.c.0.s8 %v741
          %v743 = vlaneseq
          %v744 = vshrl.u32 %v743, 7
          %v745 = vsub.s32 %v742, %v744
          %v746 = vrot.slane %v732, %v745
          %v747 = vcombine.high %v739, %v739
          %v748 = vcombine.high %v746, %v746
          %v750 = vunpack.c.l.s4 1966171168
          %v751 = vunpack.c.0.s8 %v750
          %v752 = vlaneseq
          %v753 = vshrl.u32 %v752, 7
          %v754 = vsub.s32 %v751, %v753
          %v755 = vrot.slane %v739, %v754
          %v757 = vunpack.c.l.s4 1966171168
          %v758 = vunpack.c.0.s8 %v757
          %v759 = vlaneseq
          %v760 = vshrl.u32 %v759, 7
          %v761 = vsub.s32 %v758, %v760
          %v762 = vrot.slane %v746, %v761
          %v764 = vunpack.c.l.s4 1966171168
          %v765 = vunpack.c.0.s8 %v764
          %v766 = vlaneseq
          %v767 = vshrl.u32 %v766, 7
          %v768 = vsub.s32 %v765, %v767
          %v769 = vrot.slane %v747, %v768
          %v771 = vunpack.c.l.s4 1966171168
          %v772 = vunpack.c.0.s8 %v771
          %v773 = vlaneseq
          %v774 = vshrl.u32 %v773, 7
          %v775 = vsub.s32 %v772, %v774
          %v776 = vrot.slane %v748, %v775
          %v777 = vcombine.high %v755, %v755
          %v778 = vcombine.high %v762, %v762
          %v779 = vcombine.high %v769, %v769
          %v780 = vcombine.high %v776, %v776
          %v781 = vlaneseq
          %v782 = vshrl.u32 %v781, 7
          %v783 = vsub.s32 0, %v782
          %v784 = vrot.slane %v755, %v783
          %v785 = vlaneseq
          %v786 = vshrl.u32 %v785, 7
          %v787 = vsub.s32 0, %v786
          %v788 = vrot.slane %v769, %v787
          %v789 = vlaneseq
          %v790 = vshrl.u32 %v789, 7
          %v791 = vsub.s32 0, %v790
          %v792 = vrot.slane %v777, %v791
          %v793 = vlaneseq
          %v794 = vshrl.u32 %v793, 7
          %v795 = vsub.s32 0, %v794
          %v796 = vrot.slane %v779, %v795
          %v797 = vlaneseq
          %v798 = vshrl.u32 %v797, 7
          %v799 = vsub.s32 0, %v798
          %v800 = vrot.slane %v762, %v799
          %v801 = vlaneseq
          %v802 = vshrl.u32 %v801, 7
          %v803 = vsub.s32 0, %v802
          %v804 = vrot.slane %v776, %v803
          %v805 = vlaneseq
          %v806 = vshrl.u32 %v805, 7
          %v807 = vsub.s32 0, %v806
          %v808 = vrot.slane %v778, %v807
          %v809 = vlaneseq
          %v810 = vshrl.u32 %v809, 7
          %v811 = vsub.s32 0, %v810
          %v812 = vrot.slane %v780, %v811
          %813 = vrot.lane.b32.xlu0 %v784, 32
          %v814 = vpop.permute.xlu0 %813
          %815 = vrot.lane.b32.xlu0 %v788, 32
          %v816 = vpop.permute.xlu0 %815
          %817 = vrot.lane.b32.xlu0 %v792, 32
          %v818 = vpop.permute.xlu0 %817
          %819 = vrot.lane.b32.xlu0 %v796, 32
          %v820 = vpop.permute.xlu0 %819
          %821 = vrot.lane.b32.xlu0 %v800, 32
          %v822 = vpop.permute.xlu0 %821
          %823 = vrot.lane.b32.xlu0 %v804, 32
          %v824 = vpop.permute.xlu0 %823
          %825 = vrot.lane.b32.xlu0 %v808, 32
          %v826 = vpop.permute.xlu0 %825
          %827 = vrot.lane.b32.xlu0 %v812, 32
          %v828 = vpop.permute.xlu0 %827
          %837 = vst.msk [vmem:[%s267 + $0x1] sm:$0x1] %vm610, %v814
          %838 = vst.msk [vmem:[%s267 + $0x9] sm:$0x1] %vm610, %v816
          %839 = vst.msk [vmem:[%s267 + $0x11] sm:$0x1] %vm610, %v818
          %840 = vst.msk [vmem:[%s267 + $0x19] sm:$0x1] %vm610, %v820
          %841 = vst.msk [vmem:[%s267 + $0x21] sm:$0x1] %vm610, %v822
          %842 = vst.msk [vmem:[%s267 + $0x29] sm:$0x1] %vm610, %v824
          %843 = vst.msk [vmem:[%s267 + $0x31] sm:$0x1] %vm610, %v826
          %844 = vst.msk [vmem:[%s267 + $0x39] sm:$0x1] %vm610, %v828
          %s845 = sadd.s32 %s277, 2
          %v846 = vstv %s845
          %vm847 = vcmp.lt.s32.totalorder %v387, %v846
          %v848 = vsel %vm847, 1, 0
          %vm849 = vcmp.eq.s32.totalorder %v848, 1
          %v850 = vsel %vm849, %v726, 0.0
          %v851 = vsel %vm849, %v720, 0.0
          %v852 = vlaneseq
          %v853 = vshrl.u32 %v852, 7
          %v854 = vsub.s32 2, %v853
          %v855 = vrot.slane %v377, %v854
          %857 = vrot.lane.b32.xlu0 %v850, 32
          %v858 = vpop.permute.xlu0 %857
          %v859 = vsel %vm400, %v858, 0
          %861 = vmatprep.subr.mxu0 0.0
          %862 = vmatpush1.msra.mxu0 %v380
          %863 = vmatprep.subr.mxu0 0.0
          %864 = vmatpush1.msra.mxu0 %v381
          %865 = vmatprep.subr.mxu0 0.0
          %866 = vmatpush1.msra.mxu0 %v382
          %867 = vmatprep.subr.mxu0 0.0
          %868 = vmatpush1.msra.mxu0 %v383
          %869 = vmatprep.subr.mxu0 0.0
          %870 = vmatpush1.msra.mxu0 0.0
          %871 = vmatprep.subr.mxu0 0.0
          %872 = vmatpush1.msra.mxu0 0.0
          %873 = vmatprep.subr.mxu0 0.0
          %874 = vmatpush1.msra.mxu0 0.0
          %875 = vmatprep.subr.mxu0 0.0
          %876 = vmatpush1.msra.mxu0 0.0
          %877 = vmatprep.subr.mxu0 0.0
          %878 = vmatpush1.msra.mxu0 0.0
          %879 = vmatprep.subr.mxu0 0.0
          %880 = vmatpush1.msra.mxu0 0.0
          %881 = vmatprep.subr.mxu0 0.0
          %882 = vmatpush1.msra.mxu0 0.0
          %883 = vmatprep.subr.mxu0 0.0
          %884 = vmatpush1.msra.mxu0 0.0
          %885 = vmatprep.subr.mxu0 0.0
          %886 = vmatpush1.msra.mxu0 0.0
          %887 = vmatprep.subr.mxu0 0.0
          %888 = vmatpush1.msra.mxu0 0.0
          %889 = vmatprep.subr.mxu0 0.0
          %890 = vmatpush1.msra.mxu0 0.0
          %891 = vmatprep.subr.mxu0 0.0
          %892 = vmatpush1.msra.mxu0 0.0
          %893 = vmatprep.subr.mxu0 0.0
          %894 = vmatpush1.msra.mxu0 0.0
          %895 = vmatprep.subr.mxu0 0.0
          %896 = vmatpush1.msra.mxu0 0.0
          %897 = vmatprep.subr.mxu0 0.0
          %898 = vmatpush1.msra.mxu0 0.0
          %899 = vmatprep.subr.mxu0 0.0
          %900 = vmatpush1.msra.mxu0 0.0
          %901 = vmatprep.subr.mxu0 0.0
          %902 = vmatpush1.msra.mxu0 0.0
          %903 = vmatprep.subr.mxu0 0.0
          %904 = vmatpush1.msra.mxu0 0.0
          %905 = vmatprep.subr.mxu0 0.0
          %906 = vmatpush1.msra.mxu0 0.0
          %907 = vmatprep.subr.mxu0 0.0
          %908 = vmatpush1.msra.mxu0 0.0
          %909 = vmatprep.subr.mxu0 0.0
          %910 = vmatpush1.msra.mxu0 0.0
          %911 = vmatprep.subr.mxu0 0.0
          %912 = vmatpush1.msra.mxu0 0.0
          %913 = vmatprep.subr.mxu0 0.0
          %914 = vmatpush1.msra.mxu0 0.0
          %915 = vmatprep.subr.mxu0 0.0
          %916 = vmatpush1.msra.mxu0 0.0
          %917 = vmatprep.subr.mxu0 0.0
          %918 = vmatpush1.msra.mxu0 0.0
          %919 = vmatprep.subr.mxu0 0.0
          %920 = vmatpush1.msra.mxu0 0.0
          %921 = vmatprep.subr.mxu0 0.0
          %922 = vmatpush1.msra.mxu0 0.0
          %923 = vmatprep.subr.mxu0 0.0
          %924 = vmatpush1.msra.mxu0 0.0
          %925 = vmatprep.mubr.f32.mxu0 0.0
          %926 = vmatmul.mubr.f32.gmra.mrb[0].mxu0 %v859
          %v927 = vpop.f32.mrb[0].mxu0
          %v928 = vadd.f32 %v855, %v927
          %v929 = vpop.f32.mrb[0].mxu0
          %930 = vdwg.mxu0
          %v931 = vmul.f32 %v928, 0.5
          %v932 = vtanh.pop %v931
          %v933 = vadd.f32 %v932, 1.0
          %v934 = vmul.f32 %v933, 0.5
          %v935 = vtanh.pop %v928
          %v936 = vmul.f32 %v934, %v851
          %938 = vrot.lane.b32.xlu0 %v935, 64
          %v939 = vpop.permute.xlu0 %938
          %v941 = vmul.f32 %v934, %v939
          %943 = vrot.lane.b32.xlu0 %v941, 32
          %v944 = vpop.permute.xlu0 %943
          %v946 = vadd.f32 %v936, %v944
          %v947 = vtanh.pop %v946
          %949 = vrot.lane.b32.xlu0 %v947, 64
          %v950 = vpop.permute.xlu0 %949
          %v952 = vmul.f32 %v934, %v950
          %vm953 = vcmp.le.s32.totalorder %v387, %v846
          %v954 = vsel %vm953, 1, 0
          %vm955 = vcmp.eq.s32.totalorder %v954, 1
          %v956 = vsel %vm955, %v952, 0.0
          %v958 = vcombine.high %v956, %v956
          %v960 = vunpack.c.l.s4 1966171168
          %v961 = vunpack.c.0.s8 %v960
          %v962 = vlaneseq
          %v963 = vshrl.u32 %v962, 7
          %v964 = vsub.s32 %v961, %v963
          %v965 = vrot.slane %v956, %v964
          %v967 = vunpack.c.l.s4 1966171168
          %v968 = vunpack.c.0.s8 %v967
          %v969 = vlaneseq
          %v970 = vshrl.u32 %v969, 7
          %v971 = vsub.s32 %v968, %v970
          %v972 = vrot.slane %v958, %v971
          %v973 = vcombine.high %v965, %v965
          %v974 = vcombine.high %v972, %v972
          %v976 = vunpack.c.l.s4 1966171168
          %v977 = vunpack.c.0.s8 %v976
          %v978 = vlaneseq
          %v979 = vshrl.u32 %v978, 7
          %v980 = vsub.s32 %v977, %v979
          %v981 = vrot.slane %v965, %v980
          %v983 = vunpack.c.l.s4 1966171168
          %v984 = vunpack.c.0.s8 %v983
          %v985 = vlaneseq
          %v986 = vshrl.u32 %v985, 7
          %v987 = vsub.s32 %v984, %v986
          %v988 = vrot.slane %v972, %v987
          %v990 = vunpack.c.l.s4 1966171168
          %v991 = vunpack.c.0.s8 %v990
          %v992 = vlaneseq
          %v993 = vshrl.u32 %v992, 7
          %v994 = vsub.s32 %v991, %v993
          %v995 = vrot.slane %v973, %v994
          %v997 = vunpack.c.l.s4 1966171168
          %v998 = vunpack.c.0.s8 %v997
          %v999 = vlaneseq
          %v1000 = vshrl.u32 %v999, 7
          %v1001 = vsub.s32 %v998, %v1000
          %v1002 = vrot.slane %v974, %v1001
          %v1003 = vcombine.high %v981, %v981
          %v1004 = vcombine.high %v988, %v988
          %v1005 = vcombine.high %v995, %v995
          %v1006 = vcombine.high %v1002, %v1002
          %v1007 = vlaneseq
          %v1008 = vshrl.u32 %v1007, 7
          %v1009 = vsub.s32 0, %v1008
          %v1010 = vrot.slane %v981, %v1009
          %v1011 = vlaneseq
          %v1012 = vshrl.u32 %v1011, 7
          %v1013 = vsub.s32 0, %v1012
          %v1014 = vrot.slane %v995, %v1013
          %v1015 = vlaneseq
          %v1016 = vshrl.u32 %v1015, 7
          %v1017 = vsub.s32 0, %v1016
          %v1018 = vrot.slane %v1003, %v1017
          %v1019 = vlaneseq
          %v1020 = vshrl.u32 %v1019, 7
          %v1021 = vsub.s32 0, %v1020
          %v1022 = vrot.slane %v1005, %v1021
          %v1023 = vlaneseq
          %v1024 = vshrl.u32 %v1023, 7
          %v1025 = vsub.s32 0, %v1024
          %v1026 = vrot.slane %v988, %v1025
          %v1027 = vlaneseq
          %v1028 = vshrl.u32 %v1027, 7
          %v1029 = vsub.s32 0, %v1028
          %v1030 = vrot.slane %v1002, %v1029
          %v1031 = vlaneseq
          %v1032 = vshrl.u32 %v1031, 7
          %v1033 = vsub.s32 0, %v1032
          %v1034 = vrot.slane %v1004, %v1033
          %v1035 = vlaneseq
          %v1036 = vshrl.u32 %v1035, 7
          %v1037 = vsub.s32 0, %v1036
          %v1038 = vrot.slane %v1006, %v1037
          %1039 = vrot.lane.b32.xlu0 %v1010, 32
          %v1040 = vpop.permute.xlu0 %1039
          %1041 = vrot.lane.b32.xlu0 %v1014, 32
          %v1042 = vpop.permute.xlu0 %1041
          %1043 = vrot.lane.b32.xlu0 %v1018, 32
          %v1044 = vpop.permute.xlu0 %1043
          %1045 = vrot.lane.b32.xlu0 %v1022, 32
          %v1046 = vpop.permute.xlu0 %1045
          %1047 = vrot.lane.b32.xlu0 %v1026, 32
          %v1048 = vpop.permute.xlu0 %1047
          %1049 = vrot.lane.b32.xlu0 %v1030, 32
          %v1050 = vpop.permute.xlu0 %1049
          %1051 = vrot.lane.b32.xlu0 %v1034, 32
          %v1052 = vpop.permute.xlu0 %1051
          %1053 = vrot.lane.b32.xlu0 %v1038, 32
          %v1054 = vpop.permute.xlu0 %1053
          %1063 = vst.msk [vmem:[%s267 + $0x2] sm:$0x1] %vm610, %v1040
          %1064 = vst.msk [vmem:[%s267 + $0xa] sm:$0x1] %vm610, %v1042
          %1065 = vst.msk [vmem:[%s267 + $0x12] sm:$0x1] %vm610, %v1044
          %1066 = vst.msk [vmem:[%s267 + $0x1a] sm:$0x1] %vm610, %v1046
          %1067 = vst.msk [vmem:[%s267 + $0x22] sm:$0x1] %vm610, %v1048
          %1068 = vst.msk [vmem:[%s267 + $0x2a] sm:$0x1] %vm610, %v1050
          %1069 = vst.msk [vmem:[%s267 + $0x32] sm:$0x1] %vm610, %v1052
          %1070 = vst.msk [vmem:[%s267 + $0x3a] sm:$0x1] %vm610, %v1054
          %s1071 = sadd.s32 %s277, 3
          %v1072 = vstv %s1071
          %vm1073 = vcmp.lt.s32.totalorder %v387, %v1072
          %v1074 = vsel %vm1073, 1, 0
          %vm1075 = vcmp.eq.s32.totalorder %v1074, 1
          %v1076 = vsel %vm1075, %v952, 0.0
          %v1077 = vsel %vm1075, %v946, 0.0
          %v1078 = vlaneseq
          %v1079 = vshrl.u32 %v1078, 7
          %v1080 = vsub.s32 3, %v1079
          %v1081 = vrot.slane %v377, %v1080
          %1083 = vrot.lane.b32.xlu0 %v1076, 32
          %v1084 = vpop.permute.xlu0 %1083
          %v1085 = vsel %vm400, %v1084, 0
          %1087 = vmatprep.subr.mxu0 0.0
          %1088 = vmatpush1.msra.mxu0 %v380
          %1089 = vmatprep.subr.mxu0 0.0
          %1090 = vmatpush1.msra.mxu0 %v381
          %1091 = vmatprep.subr.mxu0 0.0
          %1092 = vmatpush1.msra.mxu0 %v382
          %1093 = vmatprep.subr.mxu0 0.0
          %1094 = vmatpush1.msra.mxu0 %v383
          %1095 = vmatprep.subr.mxu0 0.0
          %1096 = vmatpush1.msra.mxu0 0.0
          %1097 = vmatprep.subr.mxu0 0.0
          %1098 = vmatpush1.msra.mxu0 0.0
          %1099 = vmatprep.subr.mxu0 0.0
          %1100 = vmatpush1.msra.mxu0 0.0
          %1101 = vmatprep.subr.mxu0 0.0
          %1102 = vmatpush1.msra.mxu0 0.0
          %1103 = vmatprep.subr.mxu0 0.0
          %1104 = vmatpush1.msra.mxu0 0.0
          %1105 = vmatprep.subr.mxu0 0.0
          %1106 = vmatpush1.msra.mxu0 0.0
          %1107 = vmatprep.subr.mxu0 0.0
          %1108 = vmatpush1.msra.mxu0 0.0
          %1109 = vmatprep.subr.mxu0 0.0
          %1110 = vmatpush1.msra.mxu0 0.0
          %1111 = vmatprep.subr.mxu0 0.0
          %1112 = vmatpush1.msra.mxu0 0.0
          %1113 = vmatprep.subr.mxu0 0.0
          %1114 = vmatpush1.msra.mxu0 0.0
          %1115 = vmatprep.subr.mxu0 0.0
          %1116 = vmatpush1.msra.mxu0 0.0
          %1117 = vmatprep.subr.mxu0 0.0
          %1118 = vmatpush1.msra.mxu0 0.0
          %1119 = vmatprep.subr.mxu0 0.0
          %1120 = vmatpush1.msra.mxu0 0.0
          %1121 = vmatprep.subr.mxu0 0.0
          %1122 = vmatpush1.msra.mxu0 0.0
          %1123 = vmatprep.subr.mxu0 0.0
          %1124 = vmatpush1.msra.mxu0 0.0
          %1125 = vmatprep.subr.mxu0 0.0
          %1126 = vmatpush1.msra.mxu0 0.0
          %1127 = vmatprep.subr.mxu0 0.0
          %1128 = vmatpush1.msra.mxu0 0.0
          %1129 = vmatprep.subr.mxu0 0.0
          %1130 = vmatpush1.msra.mxu0 0.0
          %1131 = vmatprep.subr.mxu0 0.0
          %1132 = vmatpush1.msra.mxu0 0.0
          %1133 = vmatprep.subr.mxu0 0.0
          %1134 = vmatpush1.msra.mxu0 0.0
          %1135 = vmatprep.subr.mxu0 0.0
          %1136 = vmatpush1.msra.mxu0 0.0
          %1137 = vmatprep.subr.mxu0 0.0
          %1138 = vmatpush1.msra.mxu0 0.0
          %1139 = vmatprep.subr.mxu0 0.0
          %1140 = vmatpush1.msra.mxu0 0.0
          %1141 = vmatprep.subr.mxu0 0.0
          %1142 = vmatpush1.msra.mxu0 0.0
          %1143 = vmatprep.subr.mxu0 0.0
          %1144 = vmatpush1.msra.mxu0 0.0
          %1145 = vmatprep.subr.mxu0 0.0
          %1146 = vmatpush1.msra.mxu0 0.0
          %1147 = vmatprep.subr.mxu0 0.0
          %1148 = vmatpush1.msra.mxu0 0.0
          %1149 = vmatprep.subr.mxu0 0.0
          %1150 = vmatpush1.msra.mxu0 0.0
          %1151 = vmatprep.mubr.f32.mxu0 0.0
          %1152 = vmatmul.mubr.f32.gmra.mrb[0].mxu0 %v1085
          %v1153 = vpop.f32.mrb[0].mxu0
          %v1154 = vadd.f32 %v1081, %v1153
          %v1155 = vpop.f32.mrb[0].mxu0
          %1156 = vdwg.mxu0
          %v1157 = vmul.f32 %v1154, 0.5
          %v1158 = vtanh.pop %v1157
          %v1159 = vadd.f32 %v1158, 1.0
          %v1160 = vmul.f32 %v1159, 0.5
          %v1161 = vtanh.pop %v1154
          %v1162 = vmul.f32 %v1160, %v1077
          %1164 = vrot.lane.b32.xlu0 %v1161, 64
          %v1165 = vpop.permute.xlu0 %1164
          %v1167 = vmul.f32 %v1160, %v1165
          %1169 = vrot.lane.b32.xlu0 %v1167, 32
          %v1170 = vpop.permute.xlu0 %1169
          %v1172 = vadd.f32 %v1162, %v1170
          %v1173 = vtanh.pop %v1172
          %1175 = vrot.lane.b32.xlu0 %v1173, 64
          %v1176 = vpop.permute.xlu0 %1175
          %v1178 = vmul.f32 %v1160, %v1176
          %vm1179 = vcmp.le.s32.totalorder %v387, %v1072
          %v1180 = vsel %vm1179, 1, 0
          %vm1181 = vcmp.eq.s32.totalorder %v1180, 1
          %v1182 = vsel %vm1181, %v1178, 0.0
          %v1184 = vcombine.high %v1182, %v1182
          %v1186 = vunpack.c.l.s4 1966171168
          %v1187 = vunpack.c.0.s8 %v1186
          %v1188 = vlaneseq
          %v1189 = vshrl.u32 %v1188, 7
          %v1190 = vsub.s32 %v1187, %v1189
          %v1191 = vrot.slane %v1182, %v1190
          %v1193 = vunpack.c.l.s4 1966171168
          %v1194 = vunpack.c.0.s8 %v1193
          %v1195 = vlaneseq
          %v1196 = vshrl.u32 %v1195, 7
          %v1197 = vsub.s32 %v1194, %v1196
          %v1198 = vrot.slane %v1184, %v1197
          %v1199 = vcombine.high %v1191, %v1191
          %v1200 = vcombine.high %v1198, %v1198
          %v1202 = vunpack.c.l.s4 1966171168
          %v1203 = vunpack.c.0.s8 %v1202
          %v1204 = vlaneseq
          %v1205 = vshrl.u32 %v1204, 7
          %v1206 = vsub.s32 %v1203, %v1205
          %v1207 = vrot.slane %v1191, %v1206
          %v1209 = vunpack.c.l.s4 1966171168
          %v1210 = vunpack.c.0.s8 %v1209
          %v1211 = vlaneseq
          %v1212 = vshrl.u32 %v1211, 7
          %v1213 = vsub.s32 %v1210, %v1212
          %v1214 = vrot.slane %v1198, %v1213
          %v1216 = vunpack.c.l.s4 1966171168
          %v1217 = vunpack.c.0.s8 %v1216
          %v1218 = vlaneseq
          %v1219 = vshrl.u32 %v1218, 7
          %v1220 = vsub.s32 %v1217, %v1219
          %v1221 = vrot.slane %v1199, %v1220
          %v1223 = vunpack.c.l.s4 1966171168
          %v1224 = vunpack.c.0.s8 %v1223
          %v1225 = vlaneseq
          %v1226 = vshrl.u32 %v1225, 7
          %v1227 = vsub.s32 %v1224, %v1226
          %v1228 = vrot.slane %v1200, %v1227
          %v1229 = vcombine.high %v1207, %v1207
          %v1230 = vcombine.high %v1214, %v1214
          %v1231 = vcombine.high %v1221, %v1221
          %v1232 = vcombine.high %v1228, %v1228
          %v1233 = vlaneseq
          %v1234 = vshrl.u32 %v1233, 7
          %v1235 = vsub.s32 0, %v1234
          %v1236 = vrot.slane %v1207, %v1235
          %v1237 = vlaneseq
          %v1238 = vshrl.u32 %v1237, 7
          %v1239 = vsub.s32 0, %v1238
          %v1240 = vrot.slane %v1221, %v1239
          %v1241 = vlaneseq
          %v1242 = vshrl.u32 %v1241, 7
          %v1243 = vsub.s32 0, %v1242
          %v1244 = vrot.slane %v1229, %v1243
          %v1245 = vlaneseq
          %v1246 = vshrl.u32 %v1245, 7
          %v1247 = vsub.s32 0, %v1246
          %v1248 = vrot.slane %v1231, %v1247
          %v1249 = vlaneseq
          %v1250 = vshrl.u32 %v1249, 7
          %v1251 = vsub.s32 0, %v1250
          %v1252 = vrot.slane %v1214, %v1251
          %v1253 = vlaneseq
          %v1254 = vshrl.u32 %v1253, 7
          %v1255 = vsub.s32 0, %v1254
          %v1256 = vrot.slane %v1228, %v1255
          %v1257 = vlaneseq
          %v1258 = vshrl.u32 %v1257, 7
          %v1259 = vsub.s32 0, %v1258
          %v1260 = vrot.slane %v1230, %v1259
          %v1261 = vlaneseq
          %v1262 = vshrl.u32 %v1261, 7
          %v1263 = vsub.s32 0, %v1262
          %v1264 = vrot.slane %v1232, %v1263
          %1265 = vrot.lane.b32.xlu0 %v1236, 32
          %v1266 = vpop.permute.xlu0 %1265
          %1267 = vrot.lane.b32.xlu0 %v1240, 32
          %v1268 = vpop.permute.xlu0 %1267
          %1269 = vrot.lane.b32.xlu0 %v1244, 32
          %v1270 = vpop.permute.xlu0 %1269
          %1271 = vrot.lane.b32.xlu0 %v1248, 32
          %v1272 = vpop.permute.xlu0 %1271
          %1273 = vrot.lane.b32.xlu0 %v1252, 32
          %v1274 = vpop.permute.xlu0 %1273
          %1275 = vrot.lane.b32.xlu0 %v1256, 32
          %v1276 = vpop.permute.xlu0 %1275
          %1277 = vrot.lane.b32.xlu0 %v1260, 32
          %v1278 = vpop.permute.xlu0 %1277
          %1279 = vrot.lane.b32.xlu0 %v1264, 32
          %v1280 = vpop.permute.xlu0 %1279
          %1289 = vst.msk [vmem:[%s267 + $0x3] sm:$0x1] %vm610, %v1266
          %1290 = vst.msk [vmem:[%s267 + $0xb] sm:$0x1] %vm610, %v1268
          %1291 = vst.msk [vmem:[%s267 + $0x13] sm:$0x1] %vm610, %v1270
          %1292 = vst.msk [vmem:[%s267 + $0x1b] sm:$0x1] %vm610, %v1272
          %1293 = vst.msk [vmem:[%s267 + $0x23] sm:$0x1] %vm610, %v1274
          %1294 = vst.msk [vmem:[%s267 + $0x2b] sm:$0x1] %vm610, %v1276
          %1295 = vst.msk [vmem:[%s267 + $0x33] sm:$0x1] %vm610, %v1278
          %1296 = vst.msk [vmem:[%s267 + $0x3b] sm:$0x1] %vm610, %v1280
          %s1297 = sadd.s32 %s277, 4
          %v1298 = vstv %s1297
          %vm1299 = vcmp.lt.s32.totalorder %v387, %v1298
          %v1300 = vsel %vm1299, 1, 0
          %vm1301 = vcmp.eq.s32.totalorder %v1300, 1
          %v1302 = vsel %vm1301, %v1178, 0.0
          %v1303 = vsel %vm1301, %v1172, 0.0
          %v1304 = vlaneseq
          %v1305 = vshrl.u32 %v1304, 7
          %v1306 = vsub.s32 4, %v1305
          %v1307 = vrot.slane %v377, %v1306
          %1309 = vrot.lane.b32.xlu0 %v1302, 32
          %v1310 = vpop.permute.xlu0 %1309
          %v1311 = vsel %vm400, %v1310, 0
          %1313 = vmatprep.subr.mxu0 0.0
          %1314 = vmatpush1.msra.mxu0 %v380
          %1315 = vmatprep.subr.mxu0 0.0
          %1316 = vmatpush1.msra.mxu0 %v381
          %1317 = vmatprep.subr.mxu0 0.0
          %1318 = vmatpush1.msra.mxu0 %v382
          %1319 = vmatprep.subr.mxu0 0.0
          %1320 = vmatpush1.msra.mxu0 %v383
          %1321 = vmatprep.subr.mxu0 0.0
          %1322 = vmatpush1.msra.mxu0 0.0
          %1323 = vmatprep.subr.mxu0 0.0
          %1324 = vmatpush1.msra.mxu0 0.0
          %1325 = vmatprep.subr.mxu0 0.0
          %1326 = vmatpush1.msra.mxu0 0.0
          %1327 = vmatprep.subr.mxu0 0.0
          %1328 = vmatpush1.msra.mxu0 0.0
          %1329 = vmatprep.subr.mxu0 0.0
          %1330 = vmatpush1.msra.mxu0 0.0
          %1331 = vmatprep.subr.mxu0 0.0
          %1332 = vmatpush1.msra.mxu0 0.0
          %1333 = vmatprep.subr.mxu0 0.0
          %1334 = vmatpush1.msra.mxu0 0.0
          %1335 = vmatprep.subr.mxu0 0.0
          %1336 = vmatpush1.msra.mxu0 0.0
          %1337 = vmatprep.subr.mxu0 0.0
          %1338 = vmatpush1.msra.mxu0 0.0
          %1339 = vmatprep.subr.mxu0 0.0
          %1340 = vmatpush1.msra.mxu0 0.0
          %1341 = vmatprep.subr.mxu0 0.0
          %1342 = vmatpush1.msra.mxu0 0.0
          %1343 = vmatprep.subr.mxu0 0.0
          %1344 = vmatpush1.msra.mxu0 0.0
          %1345 = vmatprep.subr.mxu0 0.0
          %1346 = vmatpush1.msra.mxu0 0.0
          %1347 = vmatprep.subr.mxu0 0.0
          %1348 = vmatpush1.msra.mxu0 0.0
          %1349 = vmatprep.subr.mxu0 0.0
          %1350 = vmatpush1.msra.mxu0 0.0
          %1351 = vmatprep.subr.mxu0 0.0
          %1352 = vmatpush1.msra.mxu0 0.0
          %1353 = vmatprep.subr.mxu0 0.0
          %1354 = vmatpush1.msra.mxu0 0.0
          %1355 = vmatprep.subr.mxu0 0.0
          %1356 = vmatpush1.msra.mxu0 0.0
          %1357 = vmatprep.subr.mxu0 0.0
          %1358 = vmatpush1.msra.mxu0 0.0
          %1359 = vmatprep.subr.mxu0 0.0
          %1360 = vmatpush1.msra.mxu0 0.0
          %1361 = vmatprep.subr.mxu0 0.0
          %1362 = vmatpush1.msra.mxu0 0.0
          %1363 = vmatprep.subr.mxu0 0.0
          %1364 = vmatpush1.msra.mxu0 0.0
          %1365 = vmatprep.subr.mxu0 0.0
          %1366 = vmatpush1.msra.mxu0 0.0
          %1367 = vmatprep.subr.mxu0 0.0
          %1368 = vmatpush1.msra.mxu0 0.0
          %1369 = vmatprep.subr.mxu0 0.0
          %1370 = vmatpush1.msra.mxu0 0.0
          %1371 = vmatprep.subr.mxu0 0.0
          %1372 = vmatpush1.msra.mxu0 0.0
          %1373 = vmatprep.subr.mxu0 0.0
          %1374 = vmatpush1.msra.mxu0 0.0
          %1375 = vmatprep.subr.mxu0 0.0
          %1376 = vmatpush1.msra.mxu0 0.0
          %1377 = vmatprep.mubr.f32.mxu0 0.0
          %1378 = vmatmul.mubr.f32.gmra.mrb[0].mxu0 %v1311
          %v1379 = vpop.f32.mrb[0].mxu0
          %v1380 = vadd.f32 %v1307, %v1379
          %v1381 = vpop.f32.mrb[0].mxu0
          %1382 = vdwg.mxu0
          %v1383 = vmul.f32 %v1380, 0.5
          %v1384 = vtanh.pop %v1383
          %v1385 = vadd.f32 %v1384, 1.0
          %v1386 = vmul.f32 %v1385, 0.5
          %v1387 = vtanh.pop %v1380
          %v1388 = vmul.f32 %v1386, %v1303
          %1390 = vrot.lane.b32.xlu0 %v1387, 64
          %v1391 = vpop.permute.xlu0 %1390
          %v1393 = vmul.f32 %v1386, %v1391
          %1395 = vrot.lane.b32.xlu0 %v1393, 32
          %v1396 = vpop.permute.xlu0 %1395
          %v1398 = vadd.f32 %v1388, %v1396
          %v1399 = vtanh.pop %v1398
          %1401 = vrot.lane.b32.xlu0 %v1399, 64
          %v1402 = vpop.permute.xlu0 %1401
          %v1404 = vmul.f32 %v1386, %v1402
          %vm1405 = vcmp.le.s32.totalorder %v387, %v1298
          %v1406 = vsel %vm1405, 1, 0
          %vm1407 = vcmp.eq.s32.totalorder %v1406, 1
          %v1408 = vsel %vm1407, %v1404, 0.0
          %v1410 = vcombine.high %v1408, %v1408
          %v1412 = vunpack.c.l.s4 1966171168
          %v1413 = vunpack.c.0.s8 %v1412
          %v1414 = vlaneseq
          %v1415 = vshrl.u32 %v1414, 7
          %v1416 = vsub.s32 %v1413, %v1415
          %v1417 = vrot.slane %v1408, %v1416
          %v1419 = vunpack.c.l.s4 1966171168
          %v1420 = vunpack.c.0.s8 %v1419
          %v1421 = vlaneseq
          %v1422 = vshrl.u32 %v1421, 7
          %v1423 = vsub.s32 %v1420, %v1422
          %v1424 = vrot.slane %v1410, %v1423
          %v1425 = vcombine.high %v1417, %v1417
          %v1426 = vcombine.high %v1424, %v1424
          %v1428 = vunpack.c.l.s4 1966171168
          %v1429 = vunpack.c.0.s8 %v1428
          %v1430 = vlaneseq
          %v1431 = vshrl.u32 %v1430, 7
          %v1432 = vsub.s32 %v1429, %v1431
          %v1433 = vrot.slane %v1417, %v1432
          %v1435 = vunpack.c.l.s4 1966171168
          %v1436 = vunpack.c.0.s8 %v1435
          %v1437 = vlaneseq
          %v1438 = vshrl.u32 %v1437, 7
          %v1439 = vsub.s32 %v1436, %v1438
          %v1440 = vrot.slane %v1424, %v1439
          %v1442 = vunpack.c.l.s4 1966171168
          %v1443 = vunpack.c.0.s8 %v1442
          %v1444 = vlaneseq
          %v1445 = vshrl.u32 %v1444, 7
          %v1446 = vsub.s32 %v1443, %v1445
          %v1447 = vrot.slane %v1425, %v1446
          %v1449 = vunpack.c.l.s4 1966171168
          %v1450 = vunpack.c.0.s8 %v1449
          %v1451 = vlaneseq
          %v1452 = vshrl.u32 %v1451, 7
          %v1453 = vsub.s32 %v1450, %v1452
          %v1454 = vrot.slane %v1426, %v1453
          %v1455 = vcombine.high %v1433, %v1433
          %v1456 = vcombine.high %v1440, %v1440
          %v1457 = vcombine.high %v1447, %v1447
          %v1458 = vcombine.high %v1454, %v1454
          %v1459 = vlaneseq
          %v1460 = vshrl.u32 %v1459, 7
          %v1461 = vsub.s32 0, %v1460
          %v1462 = vrot.slane %v1433, %v1461
          %v1463 = vlaneseq
          %v1464 = vshrl.u32 %v1463, 7
          %v1465 = vsub.s32 0, %v1464
          %v1466 = vrot.slane %v1447, %v1465
          %v1467 = vlaneseq
          %v1468 = vshrl.u32 %v1467, 7
          %v1469 = vsub.s32 0, %v1468
          %v1470 = vrot.slane %v1455, %v1469
          %v1471 = vlaneseq
          %v1472 = vshrl.u32 %v1471, 7
          %v1473 = vsub.s32 0, %v1472
          %v1474 = vrot.slane %v1457, %v1473
          %v1475 = vlaneseq
          %v1476 = vshrl.u32 %v1475, 7
          %v1477 = vsub.s32 0, %v1476
          %v1478 = vrot.slane %v1440, %v1477
          %v1479 = vlaneseq
          %v1480 = vshrl.u32 %v1479, 7
          %v1481 = vsub.s32 0, %v1480
          %v1482 = vrot.slane %v1454, %v1481
          %v1483 = vlaneseq
          %v1484 = vshrl.u32 %v1483, 7
          %v1485 = vsub.s32 0, %v1484
          %v1486 = vrot.slane %v1456, %v1485
          %v1487 = vlaneseq
          %v1488 = vshrl.u32 %v1487, 7
          %v1489 = vsub.s32 0, %v1488
          %v1490 = vrot.slane %v1458, %v1489
          %1491 = vrot.lane.b32.xlu0 %v1462, 32
          %v1492 = vpop.permute.xlu0 %1491
          %1493 = vrot.lane.b32.xlu0 %v1466, 32
          %v1494 = vpop.permute.xlu0 %1493
          %1495 = vrot.lane.b32.xlu0 %v1470, 32
          %v1496 = vpop.permute.xlu0 %1495
          %1497 = vrot.lane.b32.xlu0 %v1474, 32
          %v1498 = vpop.permute.xlu0 %1497
          %1499 = vrot.lane.b32.xlu0 %v1478, 32
          %v1500 = vpop.permute.xlu0 %1499
          %1501 = vrot.lane.b32.xlu0 %v1482, 32
          %v1502 = vpop.permute.xlu0 %1501
          %1503 = vrot.lane.b32.xlu0 %v1486, 32
          %v1504 = vpop.permute.xlu0 %1503
          %1505 = vrot.lane.b32.xlu0 %v1490, 32
          %v1506 = vpop.permute.xlu0 %1505
          %1515 = vst.msk [vmem:[%s267 + $0x4] sm:$0x1] %vm610, %v1492
          %1516 = vst.msk [vmem:[%s267 + $0xc] sm:$0x1] %vm610, %v1494
          %1517 = vst.msk [vmem:[%s267 + $0x14] sm:$0x1] %vm610, %v1496
          %1518 = vst.msk [vmem:[%s267 + $0x1c] sm:$0x1] %vm610, %v1498
          %1519 = vst.msk [vmem:[%s267 + $0x24] sm:$0x1] %vm610, %v1500
          %1520 = vst.msk [vmem:[%s267 + $0x2c] sm:$0x1] %vm610, %v1502
          %1521 = vst.msk [vmem:[%s267 + $0x34] sm:$0x1] %vm610, %v1504
          %1522 = vst.msk [vmem:[%s267 + $0x3c] sm:$0x1] %vm610, %v1506
          %s1523 = sadd.s32 %s277, 5
          %v1524 = vstv %s1523
          %vm1525 = vcmp.lt.s32.totalorder %v387, %v1524
          %v1526 = vsel %vm1525, 1, 0
          %vm1527 = vcmp.eq.s32.totalorder %v1526, 1
          %v1528 = vsel %vm1527, %v1404, 0.0
          %v1529 = vsel %vm1527, %v1398, 0.0
          %v1530 = vlaneseq
          %v1531 = vshrl.u32 %v1530, 7
          %v1532 = vsub.s32 5, %v1531
          %v1533 = vrot.slane %v377, %v1532
          %1535 = vrot.lane.b32.xlu0 %v1528, 32
          %v1536 = vpop.permute.xlu0 %1535
          %v1537 = vsel %vm400, %v1536, 0
          %1539 = vmatprep.subr.mxu0 0.0
          %1540 = vmatpush1.msra.mxu0 %v380
          %1541 = vmatprep.subr.mxu0 0.0
          %1542 = vmatpush1.msra.mxu0 %v381
          %1543 = vmatprep.subr.mxu0 0.0
          %1544 = vmatpush1.msra.mxu0 %v382
          %1545 = vmatprep.subr.mxu0 0.0
          %1546 = vmatpush1.msra.mxu0 %v383
          %1547 = vmatprep.subr.mxu0 0.0
          %1548 = vmatpush1.msra.mxu0 0.0
          %1549 = vmatprep.subr.mxu0 0.0
          %1550 = vmatpush1.msra.mxu0 0.0
          %1551 = vmatprep.subr.mxu0 0.0
          %1552 = vmatpush1.msra.mxu0 0.0
          %1553 = vmatprep.subr.mxu0 0.0
          %1554 = vmatpush1.msra.mxu0 0.0
          %1555 = vmatprep.subr.mxu0 0.0
          %1556 = vmatpush1.msra.mxu0 0.0
          %1557 = vmatprep.subr.mxu0 0.0
          %1558 = vmatpush1.msra.mxu0 0.0
          %1559 = vmatprep.subr.mxu0 0.0
          %1560 = vmatpush1.msra.mxu0 0.0
          %1561 = vmatprep.subr.mxu0 0.0
          %1562 = vmatpush1.msra.mxu0 0.0
          %1563 = vmatprep.subr.mxu0 0.0
          %1564 = vmatpush1.msra.mxu0 0.0
          %1565 = vmatprep.subr.mxu0 0.0
          %1566 = vmatpush1.msra.mxu0 0.0
          %1567 = vmatprep.subr.mxu0 0.0
          %1568 = vmatpush1.msra.mxu0 0.0
          %1569 = vmatprep.subr.mxu0 0.0
          %1570 = vmatpush1.msra.mxu0 0.0
          %1571 = vmatprep.subr.mxu0 0.0
          %1572 = vmatpush1.msra.mxu0 0.0
          %1573 = vmatprep.subr.mxu0 0.0
          %1574 = vmatpush1.msra.mxu0 0.0
          %1575 = vmatprep.subr.mxu0 0.0
          %1576 = vmatpush1.msra.mxu0 0.0
          %1577 = vmatprep.subr.mxu0 0.0
          %1578 = vmatpush1.msra.mxu0 0.0
          %1579 = vmatprep.subr.mxu0 0.0
          %1580 = vmatpush1.msra.mxu0 0.0
          %1581 = vmatprep.subr.mxu0 0.0
          %1582 = vmatpush1.msra.mxu0 0.0
          %1583 = vmatprep.subr.mxu0 0.0
          %1584 = vmatpush1.msra.mxu0 0.0
          %1585 = vmatprep.subr.mxu0 0.0
          %1586 = vmatpush1.msra.mxu0 0.0
          %1587 = vmatprep.subr.mxu0 0.0
          %1588 = vmatpush1.msra.mxu0 0.0
          %1589 = vmatprep.subr.mxu0 0.0
          %1590 = vmatpush1.msra.mxu0 0.0
          %1591 = vmatprep.subr.mxu0 0.0
          %1592 = vmatpush1.msra.mxu0 0.0
          %1593 = vmatprep.subr.mxu0 0.0
          %1594 = vmatpush1.msra.mxu0 0.0
          %1595 = vmatprep.subr.mxu0 0.0
          %1596 = vmatpush1.msra.mxu0 0.0
          %1597 = vmatprep.subr.mxu0 0.0
          %1598 = vmatpush1.msra.mxu0 0.0
          %1599 = vmatprep.subr.mxu0 0.0
          %1600 = vmatpush1.msra.mxu0 0.0
          %1601 = vmatprep.subr.mxu0 0.0
          %1602 = vmatpush1.msra.mxu0 0.0
          %1603 = vmatprep.mubr.f32.mxu0 0.0
          %1604 = vmatmul.mubr.f32.gmra.mrb[0].mxu0 %v1537
          %v1605 = vpop.f32.mrb[0].mxu0
          %v1606 = vadd.f32 %v1533, %v1605
          %v1607 = vpop.f32.mrb[0].mxu0
          %1608 = vdwg.mxu0
          %v1609 = vmul.f32 %v1606, 0.5
          %v1610 = vtanh.pop %v1609
          %v1611 = vadd.f32 %v1610, 1.0
          %v1612 = vmul.f32 %v1611, 0.5
          %v1613 = vtanh.pop %v1606
          %v1614 = vmul.f32 %v1612, %v1529
          %1616 = vrot.lane.b32.xlu0 %v1613, 64
          %v1617 = vpop.permute.xlu0 %1616
          %v1619 = vmul.f32 %v1612, %v1617
          %1621 = vrot.lane.b32.xlu0 %v1619, 32
          %v1622 = vpop.permute.xlu0 %1621
          %v1624 = vadd.f32 %v1614, %v1622
          %v1625 = vtanh.pop %v1624
          %1627 = vrot.lane.b32.xlu0 %v1625, 64
          %v1628 = vpop.permute.xlu0 %1627
          %v1630 = vmul.f32 %v1612, %v1628
          %vm1631 = vcmp.le.s32.totalorder %v387, %v1524
          %v1632 = vsel %vm1631, 1, 0
          %vm1633 = vcmp.eq.s32.totalorder %v1632, 1
          %v1634 = vsel %vm1633, %v1630, 0.0
          %v1636 = vcombine.high %v1634, %v1634
          %v1638 = vunpack.c.l.s4 1966171168
          %v1639 = vunpack.c.0.s8 %v1638
          %v1640 = vlaneseq
          %v1641 = vshrl.u32 %v1640, 7
          %v1642 = vsub.s32 %v1639, %v1641
          %v1643 = vrot.slane %v1634, %v1642
          %v1645 = vunpack.c.l.s4 1966171168
          %v1646 = vunpack.c.0.s8 %v1645
          %v1647 = vlaneseq
          %v1648 = vshrl.u32 %v1647, 7
          %v1649 = vsub.s32 %v1646, %v1648
          %v1650 = vrot.slane %v1636, %v1649
          %v1651 = vcombine.high %v1643, %v1643
          %v1652 = vcombine.high %v1650, %v1650
          %v1654 = vunpack.c.l.s4 1966171168
          %v1655 = vunpack.c.0.s8 %v1654
          %v1656 = vlaneseq
          %v1657 = vshrl.u32 %v1656, 7
          %v1658 = vsub.s32 %v1655, %v1657
          %v1659 = vrot.slane %v1643, %v1658
          %v1661 = vunpack.c.l.s4 1966171168
          %v1662 = vunpack.c.0.s8 %v1661
          %v1663 = vlaneseq
          %v1664 = vshrl.u32 %v1663, 7
          %v1665 = vsub.s32 %v1662, %v1664
          %v1666 = vrot.slane %v1650, %v1665
          %v1668 = vunpack.c.l.s4 1966171168
          %v1669 = vunpack.c.0.s8 %v1668
          %v1670 = vlaneseq
          %v1671 = vshrl.u32 %v1670, 7
          %v1672 = vsub.s32 %v1669, %v1671
          %v1673 = vrot.slane %v1651, %v1672
          %v1675 = vunpack.c.l.s4 1966171168
          %v1676 = vunpack.c.0.s8 %v1675
          %v1677 = vlaneseq
          %v1678 = vshrl.u32 %v1677, 7
          %v1679 = vsub.s32 %v1676, %v1678
          %v1680 = vrot.slane %v1652, %v1679
          %v1681 = vcombine.high %v1659, %v1659
          %v1682 = vcombine.high %v1666, %v1666
          %v1683 = vcombine.high %v1673, %v1673
          %v1684 = vcombine.high %v1680, %v1680
          %v1685 = vlaneseq
          %v1686 = vshrl.u32 %v1685, 7
          %v1687 = vsub.s32 0, %v1686
          %v1688 = vrot.slane %v1659, %v1687
          %v1689 = vlaneseq
          %v1690 = vshrl.u32 %v1689, 7
          %v1691 = vsub.s32 0, %v1690
          %v1692 = vrot.slane %v1673, %v1691
          %v1693 = vlaneseq
          %v1694 = vshrl.u32 %v1693, 7
          %v1695 = vsub.s32 0, %v1694
          %v1696 = vrot.slane %v1681, %v1695
          %v1697 = vlaneseq
          %v1698 = vshrl.u32 %v1697, 7
          %v1699 = vsub.s32 0, %v1698
          %v1700 = vrot.slane %v1683, %v1699
          %v1701 = vlaneseq
          %v1702 = vshrl.u32 %v1701, 7
          %v1703 = vsub.s32 0, %v1702
          %v1704 = vrot.slane %v1666, %v1703
          %v1705 = vlaneseq
          %v1706 = vshrl.u32 %v1705, 7
          %v1707 = vsub.s32 0, %v1706
          %v1708 = vrot.slane %v1680, %v1707
          %v1709 = vlaneseq
          %v1710 = vshrl.u32 %v1709, 7
          %v1711 = vsub.s32 0, %v1710
          %v1712 = vrot.slane %v1682, %v1711
          %v1713 = vlaneseq
          %v1714 = vshrl.u32 %v1713, 7
          %v1715 = vsub.s32 0, %v1714
          %v1716 = vrot.slane %v1684, %v1715
          %1717 = vrot.lane.b32.xlu0 %v1688, 32
          %v1718 = vpop.permute.xlu0 %1717
          %1719 = vrot.lane.b32.xlu0 %v1692, 32
          %v1720 = vpop.permute.xlu0 %1719
          %1721 = vrot.lane.b32.xlu0 %v1696, 32
          %v1722 = vpop.permute.xlu0 %1721
          %1723 = vrot.lane.b32.xlu0 %v1700, 32
          %v1724 = vpop.permute.xlu0 %1723
          %1725 = vrot.lane.b32.xlu0 %v1704, 32
          %v1726 = vpop.permute.xlu0 %1725
          %1727 = vrot.lane.b32.xlu0 %v1708, 32
          %v1728 = vpop.permute.xlu0 %1727
          %1729 = vrot.lane.b32.xlu0 %v1712, 32
          %v1730 = vpop.permute.xlu0 %1729
          %1731 = vrot.lane.b32.xlu0 %v1716, 32
          %v1732 = vpop.permute.xlu0 %1731
          %1741 = vst.msk [vmem:[%s267 + $0x5] sm:$0x1] %vm610, %v1718
          %1742 = vst.msk [vmem:[%s267 + $0xd] sm:$0x1] %vm610, %v1720
          %1743 = vst.msk [vmem:[%s267 + $0x15] sm:$0x1] %vm610, %v1722
          %1744 = vst.msk [vmem:[%s267 + $0x1d] sm:$0x1] %vm610, %v1724
          %1745 = vst.msk [vmem:[%s267 + $0x25] sm:$0x1] %vm610, %v1726
          %1746 = vst.msk [vmem:[%s267 + $0x2d] sm:$0x1] %vm610, %v1728
          %1747 = vst.msk [vmem:[%s267 + $0x35] sm:$0x1] %vm610, %v1730
          %1748 = vst.msk [vmem:[%s267 + $0x3d] sm:$0x1] %vm610, %v1732
          %s1749 = sadd.s32 %s277, 6
          %v1750 = vstv %s1749
          %vm1751 = vcmp.lt.s32.totalorder %v387, %v1750
          %v1752 = vsel %vm1751, 1, 0
          %vm1753 = vcmp.eq.s32.totalorder %v1752, 1
          %v1754 = vsel %vm1753, %v1630, 0.0
          %v1755 = vsel %vm1753, %v1624, 0.0
          %v1756 = vlaneseq
          %v1757 = vshrl.u32 %v1756, 7
          %v1758 = vsub.s32 6, %v1757
          %v1759 = vrot.slane %v377, %v1758
          %1761 = vrot.lane.b32.xlu0 %v1754, 32
          %v1762 = vpop.permute.xlu0 %1761
          %v1763 = vsel %vm400, %v1762, 0
          %1765 = vmatprep.subr.mxu0 0.0
          %1766 = vmatpush1.msra.mxu0 %v380
          %1767 = vmatprep.subr.mxu0 0.0
          %1768 = vmatpush1.msra.mxu0 %v381
          %1769 = vmatprep.subr.mxu0 0.0
          %1770 = vmatpush1.msra.mxu0 %v382
          %1771 = vmatprep.subr.mxu0 0.0
          %1772 = vmatpush1.msra.mxu0 %v383
          %1773 = vmatprep.subr.mxu0 0.0
          %1774 = vmatpush1.msra.mxu0 0.0
          %1775 = vmatprep.subr.mxu0 0.0
          %1776 = vmatpush1.msra.mxu0 0.0
          %1777 = vmatprep.subr.mxu0 0.0
          %1778 = vmatpush1.msra.mxu0 0.0
          %1779 = vmatprep.subr.mxu0 0.0
          %1780 = vmatpush1.msra.mxu0 0.0
          %1781 = vmatprep.subr.mxu0 0.0
          %1782 = vmatpush1.msra.mxu0 0.0
          %1783 = vmatprep.subr.mxu0 0.0
          %1784 = vmatpush1.msra.mxu0 0.0
          %1785 = vmatprep.subr.mxu0 0.0
          %1786 = vmatpush1.msra.mxu0 0.0
          %1787 = vmatprep.subr.mxu0 0.0
          %1788 = vmatpush1.msra.mxu0 0.0
          %1789 = vmatprep.subr.mxu0 0.0
          %1790 = vmatpush1.msra.mxu0 0.0
          %1791 = vmatprep.subr.mxu0 0.0
          %1792 = vmatpush1.msra.mxu0 0.0
          %1793 = vmatprep.subr.mxu0 0.0
          %1794 = vmatpush1.msra.mxu0 0.0
          %1795 = vmatprep.subr.mxu0 0.0
          %1796 = vmatpush1.msra.mxu0 0.0
          %1797 = vmatprep.subr.mxu0 0.0
          %1798 = vmatpush1.msra.mxu0 0.0
          %1799 = vmatprep.subr.mxu0 0.0
          %1800 = vmatpush1.msra.mxu0 0.0
          %1801 = vmatprep.subr.mxu0 0.0
          %1802 = vmatpush1.msra.mxu0 0.0
          %1803 = vmatprep.subr.mxu0 0.0
          %1804 = vmatpush1.msra.mxu0 0.0
          %1805 = vmatprep.subr.mxu0 0.0
          %1806 = vmatpush1.msra.mxu0 0.0
          %1807 = vmatprep.subr.mxu0 0.0
          %1808 = vmatpush1.msra.mxu0 0.0
          %1809 = vmatprep.subr.mxu0 0.0
          %1810 = vmatpush1.msra.mxu0 0.0
          %1811 = vmatprep.subr.mxu0 0.0
          %1812 = vmatpush1.msra.mxu0 0.0
          %1813 = vmatprep.subr.mxu0 0.0
          %1814 = vmatpush1.msra.mxu0 0.0
          %1815 = vmatprep.subr.mxu0 0.0
          %1816 = vmatpush1.msra.mxu0 0.0
          %1817 = vmatprep.subr.mxu0 0.0
          %1818 = vmatpush1.msra.mxu0 0.0
          %1819 = vmatprep.subr.mxu0 0.0
          %1820 = vmatpush1.msra.mxu0 0.0
          %1821 = vmatprep.subr.mxu0 0.0
          %1822 = vmatpush1.msra.mxu0 0.0
          %1823 = vmatprep.subr.mxu0 0.0
          %1824 = vmatpush1.msra.mxu0 0.0
          %1825 = vmatprep.subr.mxu0 0.0
          %1826 = vmatpush1.msra.mxu0 0.0
          %1827 = vmatprep.subr.mxu0 0.0
          %1828 = vmatpush1.msra.mxu0 0.0
          %1829 = vmatprep.mubr.f32.mxu0 0.0
          %1830 = vmatmul.mubr.f32.gmra.mrb[0].mxu0 %v1763
          %v1831 = vpop.f32.mrb[0].mxu0
          %v1832 = vadd.f32 %v1759, %v1831
          %v1833 = vpop.f32.mrb[0].mxu0
          %1834 = vdwg.mxu0
          %v1835 = vmul.f32 %v1832, 0.5
          %v1836 = vtanh.pop %v1835
          %v1837 = vadd.f32 %v1836, 1.0
          %v1838 = vmul.f32 %v1837, 0.5
          %v1839 = vtanh.pop %v1832
          %v1840 = vmul.f32 %v1838, %v1755
          %1842 = vrot.lane.b32.xlu0 %v1839, 64
          %v1843 = vpop.permute.xlu0 %1842
          %v1845 = vmul.f32 %v1838, %v1843
          %1847 = vrot.lane.b32.xlu0 %v1845, 32
          %v1848 = vpop.permute.xlu0 %1847
          %v1850 = vadd.f32 %v1840, %v1848
          %v1851 = vtanh.pop %v1850
          %1853 = vrot.lane.b32.xlu0 %v1851, 64
          %v1854 = vpop.permute.xlu0 %1853
          %v1856 = vmul.f32 %v1838, %v1854
          %vm1857 = vcmp.le.s32.totalorder %v387, %v1750
          %v1858 = vsel %vm1857, 1, 0
          %vm1859 = vcmp.eq.s32.totalorder %v1858, 1
          %v1860 = vsel %vm1859, %v1856, 0.0
          %v1862 = vcombine.high %v1860, %v1860
          %v1864 = vunpack.c.l.s4 1966171168
          %v1865 = vunpack.c.0.s8 %v1864
          %v1866 = vlaneseq
          %v1867 = vshrl.u32 %v1866, 7
          %v1868 = vsub.s32 %v1865, %v1867
          %v1869 = vrot.slane %v1860, %v1868
          %v1871 = vunpack.c.l.s4 1966171168
          %v1872 = vunpack.c.0.s8 %v1871
          %v1873 = vlaneseq
          %v1874 = vshrl.u32 %v1873, 7
          %v1875 = vsub.s32 %v1872, %v1874
          %v1876 = vrot.slane %v1862, %v1875
          %v1877 = vcombine.high %v1869, %v1869
          %v1878 = vcombine.high %v1876, %v1876
          %v1880 = vunpack.c.l.s4 1966171168
          %v1881 = vunpack.c.0.s8 %v1880
          %v1882 = vlaneseq
          %v1883 = vshrl.u32 %v1882, 7
          %v1884 = vsub.s32 %v1881, %v1883
          %v1885 = vrot.slane %v1869, %v1884
          %v1887 = vunpack.c.l.s4 1966171168
          %v1888 = vunpack.c.0.s8 %v1887
          %v1889 = vlaneseq
          %v1890 = vshrl.u32 %v1889, 7
          %v1891 = vsub.s32 %v1888, %v1890
          %v1892 = vrot.slane %v1876, %v1891
          %v1894 = vunpack.c.l.s4 1966171168
          %v1895 = vunpack.c.0.s8 %v1894
          %v1896 = vlaneseq
          %v1897 = vshrl.u32 %v1896, 7
          %v1898 = vsub.s32 %v1895, %v1897
          %v1899 = vrot.slane %v1877, %v1898
          %v1901 = vunpack.c.l.s4 1966171168
          %v1902 = vunpack.c.0.s8 %v1901
          %v1903 = vlaneseq
          %v1904 = vshrl.u32 %v1903, 7
          %v1905 = vsub.s32 %v1902, %v1904
          %v1906 = vrot.slane %v1878, %v1905
          %v1907 = vcombine.high %v1885, %v1885
          %v1908 = vcombine.high %v1892, %v1892
          %v1909 = vcombine.high %v1899, %v1899
          %v1910 = vcombine.high %v1906, %v1906
          %v1911 = vlaneseq
          %v1912 = vshrl.u32 %v1911, 7
          %v1913 = vsub.s32 0, %v1912
          %v1914 = vrot.slane %v1885, %v1913
          %v1915 = vlaneseq
          %v1916 = vshrl.u32 %v1915, 7
          %v1917 = vsub.s32 0, %v1916
          %v1918 = vrot.slane %v1899, %v1917
          %v1919 = vlaneseq
          %v1920 = vshrl.u32 %v1919, 7
          %v1921 = vsub.s32 0, %v1920
          %v1922 = vrot.slane %v1907, %v1921
          %v1923 = vlaneseq
          %v1924 = vshrl.u32 %v1923, 7
          %v1925 = vsub.s32 0, %v1924
          %v1926 = vrot.slane %v1909, %v1925
          %v1927 = vlaneseq
          %v1928 = vshrl.u32 %v1927, 7
          %v1929 = vsub.s32 0, %v1928
          %v1930 = vrot.slane %v1892, %v1929
          %v1931 = vlaneseq
          %v1932 = vshrl.u32 %v1931, 7
          %v1933 = vsub.s32 0, %v1932
          %v1934 = vrot.slane %v1906, %v1933
          %v1935 = vlaneseq
          %v1936 = vshrl.u32 %v1935, 7
          %v1937 = vsub.s32 0, %v1936
          %v1938 = vrot.slane %v1908, %v1937
          %v1939 = vlaneseq
          %v1940 = vshrl.u32 %v1939, 7
          %v1941 = vsub.s32 0, %v1940
          %v1942 = vrot.slane %v1910, %v1941
          %1943 = vrot.lane.b32.xlu0 %v1914, 32
          %v1944 = vpop.permute.xlu0 %1943
          %1945 = vrot.lane.b32.xlu0 %v1918, 32
          %v1946 = vpop.permute.xlu0 %1945
          %1947 = vrot.lane.b32.xlu0 %v1922, 32
          %v1948 = vpop.permute.xlu0 %1947
          %1949 = vrot.lane.b32.xlu0 %v1926, 32
          %v1950 = vpop.permute.xlu0 %1949
          %1951 = vrot.lane.b32.xlu0 %v1930, 32
          %v1952 = vpop.permute.xlu0 %1951
          %1953 = vrot.lane.b32.xlu0 %v1934, 32
          %v1954 = vpop.permute.xlu0 %1953
          %1955 = vrot.lane.b32.xlu0 %v1938, 32
          %v1956 = vpop.permute.xlu0 %1955
          %1957 = vrot.lane.b32.xlu0 %v1942, 32
          %v1958 = vpop.permute.xlu0 %1957
          %1967 = vst.msk [vmem:[%s267 + $0x6] sm:$0x1] %vm610, %v1944
          %1968 = vst.msk [vmem:[%s267 + $0xe] sm:$0x1] %vm610, %v1946
          %1969 = vst.msk [vmem:[%s267 + $0x16] sm:$0x1] %vm610, %v1948
          %1970 = vst.msk [vmem:[%s267 + $0x1e] sm:$0x1] %vm610, %v1950
          %1971 = vst.msk [vmem:[%s267 + $0x26] sm:$0x1] %vm610, %v1952
          %1972 = vst.msk [vmem:[%s267 + $0x2e] sm:$0x1] %vm610, %v1954
          %1973 = vst.msk [vmem:[%s267 + $0x36] sm:$0x1] %vm610, %v1956
          %1974 = vst.msk [vmem:[%s267 + $0x3e] sm:$0x1] %vm610, %v1958
          %v1975 = vstv %s278
          %vm1976 = vcmp.lt.s32.totalorder %v387, %v1975
          %v1977 = vsel %vm1976, 1, 0
          %vm1978 = vcmp.eq.s32.totalorder %v1977, 1
          %v1979 = vsel %vm1978, %v1856, 0.0
          %v1980 = vsel %vm1978, %v1850, 0.0
          %v1981 = vlaneseq
          %v1982 = vshrl.u32 %v1981, 7
          %v1983 = vsub.s32 7, %v1982
          %v1984 = vrot.slane %v377, %v1983
          %1986 = vrot.lane.b32.xlu0 %v1979, 32
          %v1987 = vpop.permute.xlu0 %1986
          %v1988 = vsel %vm400, %v1987, 0
          %1990 = vmatprep.subr.mxu0 0.0
          %1991 = vmatpush1.msra.mxu0 %v380
          %1992 = vmatprep.subr.mxu0 0.0
          %1993 = vmatpush1.msra.mxu0 %v381
          %1994 = vmatprep.subr.mxu0 0.0
          %1995 = vmatpush1.msra.mxu0 %v382
          %1996 = vmatprep.subr.mxu0 0.0
          %1997 = vmatpush1.msra.mxu0 %v383
          %1998 = vmatprep.subr.mxu0 0.0
          %1999 = vmatpush1.msra.mxu0 0.0
          %2000 = vmatprep.subr.mxu0 0.0
          %2001 = vmatpush1.msra.mxu0 0.0
          %2002 = vmatprep.subr.mxu0 0.0
          %2003 = vmatpush1.msra.mxu0 0.0
          %2004 = vmatprep.subr.mxu0 0.0
          %2005 = vmatpush1.msra.mxu0 0.0
          %2006 = vmatprep.subr.mxu0 0.0
          %2007 = vmatpush1.msra.mxu0 0.0
          %2008 = vmatprep.subr.mxu0 0.0
          %2009 = vmatpush1.msra.mxu0 0.0
          %2010 = vmatprep.subr.mxu0 0.0
          %2011 = vmatpush1.msra.mxu0 0.0
          %2012 = vmatprep.subr.mxu0 0.0
          %2013 = vmatpush1.msra.mxu0 0.0
          %2014 = vmatprep.subr.mxu0 0.0
          %2015 = vmatpush1.msra.mxu0 0.0
          %2016 = vmatprep.subr.mxu0 0.0
          %2017 = vmatpush1.msra.mxu0 0.0
          %2018 = vmatprep.subr.mxu0 0.0
          %2019 = vmatpush1.msra.mxu0 0.0
          %2020 = vmatprep.subr.mxu0 0.0
          %2021 = vmatpush1.msra.mxu0 0.0
          %2022 = vmatprep.subr.mxu0 0.0
          %2023 = vmatpush1.msra.mxu0 0.0
          %2024 = vmatprep.subr.mxu0 0.0
          %2025 = vmatpush1.msra.mxu0 0.0
          %2026 = vmatprep.subr.mxu0 0.0
          %2027 = vmatpush1.msra.mxu0 0.0
          %2028 = vmatprep.subr.mxu0 0.0
          %2029 = vmatpush1.msra.mxu0 0.0
          %2030 = vmatprep.subr.mxu0 0.0
          %2031 = vmatpush1.msra.mxu0 0.0
          %2032 = vmatprep.subr.mxu0 0.0
          %2033 = vmatpush1.msra.mxu0 0.0
          %2034 = vmatprep.subr.mxu0 0.0
          %2035 = vmatpush1.msra.mxu0 0.0
          %2036 = vmatprep.subr.mxu0 0.0
          %2037 = vmatpush1.msra.mxu0 0.0
          %2038 = vmatprep.subr.mxu0 0.0
          %2039 = vmatpush1.msra.mxu0 0.0
          %2040 = vmatprep.subr.mxu0 0.0
          %2041 = vmatpush1.msra.mxu0 0.0
          %2042 = vmatprep.subr.mxu0 0.0
          %2043 = vmatpush1.msra.mxu0 0.0
          %2044 = vmatprep.subr.mxu0 0.0
          %2045 = vmatpush1.msra.mxu0 0.0
          %2046 = vmatprep.subr.mxu0 0.0
          %2047 = vmatpush1.msra.mxu0 0.0
          %2048 = vmatprep.subr.mxu0 0.0
          %2049 = vmatpush1.msra.mxu0 0.0
          %2050 = vmatprep.subr.mxu0 0.0
          %2051 = vmatpush1.msra.mxu0 0.0
          %2052 = vmatprep.subr.mxu0 0.0
          %2053 = vmatpush1.msra.mxu0 0.0
          %2054 = vmatprep.mubr.f32.mxu0 0.0
          %2055 = vmatmul.mubr.f32.gmra.mrb[0].mxu0 %v1988
          %v2056 = vpop.f32.mrb[0].mxu0
          %v2057 = vadd.f32 %v1984, %v2056
          %v2058 = vpop.f32.mrb[0].mxu0
          %2059 = vdwg.mxu0
          %v2060 = vmul.f32 %v2057, 0.5
          %v2061 = vtanh.pop %v2060
          %v2062 = vadd.f32 %v2061, 1.0
          %v2063 = vmul.f32 %v2062, 0.5
          %v2064 = vtanh.pop %v2057
          %v2065 = vmul.f32 %v2063, %v1980
          %2067 = vrot.lane.b32.xlu0 %v2064, 64
          %v2068 = vpop.permute.xlu0 %2067
          %v2070 = vmul.f32 %v2063, %v2068
          %2072 = vrot.lane.b32.xlu0 %v2070, 32
          %v2073 = vpop.permute.xlu0 %2072
          %v2075 = vadd.f32 %v2065, %v2073
          %v2076 = vtanh.pop %v2075
          %2078 = vrot.lane.b32.xlu0 %v2076, 64
          %v2079 = vpop.permute.xlu0 %2078
          %v2081 = vmul.f32 %v2063, %v2079
          %vm2082 = vcmp.le.s32.totalorder %v387, %v1975
          %v2083 = vsel %vm2082, 1, 0
          %vm2084 = vcmp.eq.s32.totalorder %v2083, 1
          %v2085 = vsel %vm2084, %v2081, 0.0
          %v2087 = vcombine.high %v2085, %v2085
          %v2089 = vunpack.c.l.s4 1966171168
          %v2090 = vunpack.c.0.s8 %v2089
          %v2091 = vlaneseq
          %v2092 = vshrl.u32 %v2091, 7
          %v2093 = vsub.s32 %v2090, %v2092
          %v2094 = vrot.slane %v2085, %v2093
          %v2096 = vunpack.c.l.s4 1966171168
          %v2097 = vunpack.c.0.s8 %v2096
          %v2098 = vlaneseq
          %v2099 = vshrl.u32 %v2098, 7
          %v2100 = vsub.s32 %v2097, %v2099
          %v2101 = vrot.slane %v2087, %v2100
          %v2102 = vcombine.high %v2094, %v2094
          %v2103 = vcombine.high %v2101, %v2101
          %v2105 = vunpack.c.l.s4 1966171168
          %v2106 = vunpack.c.0.s8 %v2105
          %v2107 = vlaneseq
          %v2108 = vshrl.u32 %v2107, 7
          %v2109 = vsub.s32 %v2106, %v2108
          %v2110 = vrot.slane %v2094, %v2109
          %v2112 = vunpack.c.l.s4 1966171168
          %v2113 = vunpack.c.0.s8 %v2112
          %v2114 = vlaneseq
          %v2115 = vshrl.u32 %v2114, 7
          %v2116 = vsub.s32 %v2113, %v2115
          %v2117 = vrot.slane %v2101, %v2116
          %v2119 = vunpack.c.l.s4 1966171168
          %v2120 = vunpack.c.0.s8 %v2119
          %v2121 = vlaneseq
          %v2122 = vshrl.u32 %v2121, 7
          %v2123 = vsub.s32 %v2120, %v2122
          %v2124 = vrot.slane %v2102, %v2123
          %v2126 = vunpack.c.l.s4 1966171168
          %v2127 = vunpack.c.0.s8 %v2126
          %v2128 = vlaneseq
          %v2129 = vshrl.u32 %v2128, 7
          %v2130 = vsub.s32 %v2127, %v2129
          %v2131 = vrot.slane %v2103, %v2130
          %v2132 = vcombine.high %v2110, %v2110
          %v2133 = vcombine.high %v2117, %v2117
          %v2134 = vcombine.high %v2124, %v2124
          %v2135 = vcombine.high %v2131, %v2131
          %v2136 = vlaneseq
          %v2137 = vshrl.u32 %v2136, 7
          %v2138 = vsub.s32 0, %v2137
          %v2139 = vrot.slane %v2110, %v2138
          %v2140 = vlaneseq
          %v2141 = vshrl.u32 %v2140, 7
          %v2142 = vsub.s32 0, %v2141
          %v2143 = vrot.slane %v2124, %v2142
          %v2144 = vlaneseq
          %v2145 = vshrl.u32 %v2144, 7
          %v2146 = vsub.s32 0, %v2145
          %v2147 = vrot.slane %v2132, %v2146
          %v2148 = vlaneseq
          %v2149 = vshrl.u32 %v2148, 7
          %v2150 = vsub.s32 0, %v2149
          %v2151 = vrot.slane %v2134, %v2150
          %v2152 = vlaneseq
          %v2153 = vshrl.u32 %v2152, 7
          %v2154 = vsub.s32 0, %v2153
          %v2155 = vrot.slane %v2117, %v2154
          %v2156 = vlaneseq
          %v2157 = vshrl.u32 %v2156, 7
          %v2158 = vsub.s32 0, %v2157
          %v2159 = vrot.slane %v2131, %v2158
          %v2160 = vlaneseq
          %v2161 = vshrl.u32 %v2160, 7
          %v2162 = vsub.s32 0, %v2161
          %v2163 = vrot.slane %v2133, %v2162
          %v2164 = vlaneseq
          %v2165 = vshrl.u32 %v2164, 7
          %v2166 = vsub.s32 0, %v2165
          %v2167 = vrot.slane %v2135, %v2166
          %2168 = vrot.lane.b32.xlu0 %v2139, 32
          %v2169 = vpop.permute.xlu0 %2168
          %2170 = vrot.lane.b32.xlu0 %v2143, 32
          %v2171 = vpop.permute.xlu0 %2170
          %2172 = vrot.lane.b32.xlu0 %v2147, 32
          %v2173 = vpop.permute.xlu0 %2172
          %2174 = vrot.lane.b32.xlu0 %v2151, 32
          %v2175 = vpop.permute.xlu0 %2174
          %2176 = vrot.lane.b32.xlu0 %v2155, 32
          %v2177 = vpop.permute.xlu0 %2176
          %2178 = vrot.lane.b32.xlu0 %v2159, 32
          %v2179 = vpop.permute.xlu0 %2178
          %2180 = vrot.lane.b32.xlu0 %v2163, 32
          %v2181 = vpop.permute.xlu0 %2180
          %2182 = vrot.lane.b32.xlu0 %v2167, 32
          %v2183 = vpop.permute.xlu0 %2182
          %2192 = vst.msk [vmem:[%s267 + $0x7] sm:$0x1] %vm610, %v2169
          %2193 = vst.msk [vmem:[%s267 + $0xf] sm:$0x1] %vm610, %v2171
          %2194 = vst.msk [vmem:[%s267 + $0x17] sm:$0x1] %vm610, %v2173
          %2195 = vst.msk [vmem:[%s267 + $0x1f] sm:$0x1] %vm610, %v2175
          %2196 = vst.msk [vmem:[%s267 + $0x27] sm:$0x1] %vm610, %v2177
          %2197 = vst.msk [vmem:[%s267 + $0x2f] sm:$0x1] %vm610, %v2179
          %2198 = vst.msk [vmem:[%s267 + $0x37] sm:$0x1] %vm610, %v2181
          %2199 = vst.msk [vmem:[%s267 + $0x3f] sm:$0x1] %vm610, %v2183
          %2201 = vrot.lane.b32.xlu0 %v2081, 32
          %v2202 = vpop.permute.xlu0 %2201
          %2204 = vst.msk [vmem:[#allocation2] sm:$0xff] %vm400, %v2202
          %2206 = vrot.lane.b32.xlu0 %v2075, 96
          %v2207 = vpop.permute.xlu0 %2206
          %2209 = vst.msk [vmem:[#allocation3] sm:$0xff] %vm400, %v2207
        $region60: #{b1_forward.1} parent=35 // pred_fallthru
          _
        %s2210 = sand.u32 %s144, 1
        %s2211 = scalar_lea.sflag [#allocation6], %s2210
        %s2212 = sand.u32 %s144, 1
        %s2213 = smul.addr %s2212, 64
        %s2214 = scalar_lea.vmem [#allocation10], %s2213
        // Predicated region
        $region61: #{b1_forward.1} parent=35 // pred_check
          %p2215 = pneg %p154
        $region62: #{b1_forward.1} parent=35 // pred_check_branch
          %2217 = sbr.rel (%p2215) target = $region64
        $region63: #{b1_forward.1} parent=35 // pred_region
          %s2218 = smul.u32 8, %s28
          %s2220 = ssub.s32 1024, 1024
          %2221 = vsyncadd %s2211, %s2220
          %s2222 = sadd.s32 %s29, %s2218
          %s2223 = smul.addr %s27, 8
          %s2224 = sadd.s32 %s2222, %s2223
          %s2225 = smul.addr %s2224, 128
          %s2226 = scalar_lea.hbm %s4, %s2225
          %s2227 = sshll.u32 %s2214, 4
          %s2228 = int_to_ptr.vmem [resolvable:$true] %s2227
          %2233 = dma.vmem_to_hbm [thread:$0]  %s2228, 1024, %s2226, %s2211, 128, 128, 8
        $region64: #{b1_forward.1} parent=35 // pred_fallthru
          _
      $region36: #{b1_forward.1} parent=5 // pred_fallthru
        _
      %p2234 = scmp.le.s32.totalorder 2, %s17
      // Predicated region
      $region65: #{b1_forward.1} parent=5 // pred_check
        %p2235 = pneg %p2234
      $region66: #{b1_forward.1} parent=5 // pred_check_branch
        %2237 = sbr.rel (%p2235) target = $region68
      $region67: #{b1_forward.1} parent=5 // pred_region
        %s2238 = ssub.s32 %s17, 2
        // Predicated region
        $region69: #{b1_forward.1} parent=67 // pred_check
          %p2239 = pneg %p160
        $region70: #{b1_forward.1} parent=67 // pred_check_branch
          %2241 = sbr.rel (%p2239) target = $region72
        $region71: #{b1_forward.1} parent=67 // pred_region
          %s2242 = sand.u32 %s145, 1
          %s2243 = scalar_lea.sflag [#allocation6], %s2242
          %s2244 = sand.u32 %s145, 1
          %s2245 = smul.addr %s2244, 64
          %s2246 = scalar_lea.vmem [#allocation10], %s2245
          %2247 = dma.done %s2243, 1024
        $region72: #{b1_forward.1} parent=67 // pred_fallthru
          _
      $region68: #{b1_forward.1} parent=5 // pred_fallthru
        _
    $region6: #{b1_forward.1} parent=1 // loop_footer
      %s21 = sadd.s32 1, %s17
    $region7: #{b1_forward.1} parent=1 // loop_footer_branch
      %16 = sbr.rel target = $region3
    $region8: #{b1_forward.1} parent=1 // loop_exit
      _
    %2248 = vsyncpa [#allocation5], 1
    %s2249 = scalar_lea.sflag [#allocation5], 1
    %2250 = vsyncpa %s2249, 1
    %2251 = vsyncpa [#allocation8], 1
    %2252 = vsyncpa [#allocation6], 1
    %s2253 = scalar_lea.sflag [#allocation6], 1
    %2254 = vsyncpa %s2253, 1

</llo_original>
